<compile_context>
chip_gen: v7x
topology: tpu7x:2x2x1
jax: 0.10.0
libtpu: 0.0.40
codegen_flags: <defaults>
</compile_context>

<pallas_src>
import jax
import jax.numpy as jnp
import numpy as np
from jax.experimental import pallas as pl
from jax.experimental.pallas import tpu as pltpu


def _pick_tile_n(n):
    """Largest node-tile that divides N and is a multiple of 8 (else N)."""
    for t in (512, 256, 128, 64, 32, 16, 8):
        if n % t == 0:
            return t
    return n


def _feature_aggregation_kernel(idx_sref, idxv_ref, x_ref, adj_ref, cnt_ref,
                                out_ref, sel_ref, nn_ref):
    """One (batch b, node-tile nt) grid step.

    idx_sref : SMEM (B, M) int32    scalar-prefetched flattened indices
    idxv_ref : VMEM (1, M) int32    same indices as a vector (for the one-hot)
    x_ref    : VMEM (N, D) f32      all node features of batch b
    adj_ref  : VMEM (K, Nk, Nk) f32 per-group adjacency of batch b
    cnt_ref  : VMEM (TILE_N, 1) f32 1e-14 + occurrence count (this node tile)
    out_ref  : VMEM (TILE_N, D) f32 aggregated features (this node tile)
    sel_ref  : VMEM scratch (M, D)  gathered rows
    nn_ref   : VMEM scratch (M, D)  adj @ gathered rows
    """
    K, Nk, _ = adj_ref.shape
    M, _ = sel_ref.shape
    tile_n = out_ref.shape[0]

    b = pl.program_id(0)
    nt = pl.program_id(1)

    # 1) exact gather: sel[m, :] = x[indices[b, m], :]  (no MXU, no precision loss)
    # TODO(synk): switch to lax.fori_loop with a dynamic-index store if M gets large.
    for m in range(M):
        i = idx_sref[b, m]
        sel_ref[pl.ds(m, 1), :] = x_ref[pl.ds(i, 1), :]

    # 2) per-group aggregation: nn[k*Nk:(k+1)*Nk] = adj[k] @ sel[k*Nk:(k+1)*Nk]
    #    (K small matmuls -- no block-diagonal zero-multiplication).
    hi = jax.lax.Precision.HIGHEST
    for k in range(K):
        nn_ref[k * Nk:(k + 1) * Nk, :] = jnp.dot(
            adj_ref[k], sel_ref[k * Nk:(k + 1) * Nk, :],
            preferred_element_type=jnp.float32, precision=hi)

    # 3) scatter_add over this node tile as a one-hot matmul on the MXU
    #    (duplicate indices accumulate correctly).
    rows = nt * tile_n + jax.lax.broadcasted_iota(jnp.int32, (tile_n, M), 0)
    s_onehot = (rows == idxv_ref[...]).astype(jnp.float32)           # (TILE_N, M)
    scattered = jnp.dot(s_onehot, nn_ref[...],
                        preferred_element_type=jnp.float32, precision=hi)

    # 4) normalize: out = scattered / (count + 1e-14); counts precomputed in
    #    the wrapper, so only a reciprocal-multiply remains here.
    out_ref[...] = scattered * pl.reciprocal(cnt_ref[...])


def feature_aggregation_forward(x, adj, batch_indices, indices):
    """Pallas port of feature_aggregation.forward.

    x            : (B, N, D) float
    adj          : (B, K, Nk, Nk) float
    batch_indices: (B, 1, 1) int32 (arange(B) broadcast; implicit in the
                   per-batch grid, kept for API parity)
    indices      : (B, K, Nk) int32, values in [0, N)
    returns      : (B, N, D) float32
    """
    del batch_indices  # implicit in the per-batch grid
    B, N, D = x.shape
    _, K, Nk = indices.shape
    M = K * Nk
    tile_n = _pick_tile_n(N)
    n_tiles = N // tile_n

    x32 = x.astype(jnp.float32)
    adj32 = adj.astype(jnp.float32)
    idx_smem = indices.reshape(B, M).astype(jnp.int32)
    idx_vmem = idx_smem.reshape(B, 1, M)

    # Counts depend only on `indices`: precompute 1e-14 + occurrence count.
    b_ix = jnp.arange(B, dtype=jnp.int32)[:, None]
    cnt = jnp.full((B, N), 1e-14, dtype=jnp.float32).at[b_ix, idx_smem].add(1.0)
    cnt = cnt[..., None]                                             # (B, N, 1)

    # Explicit VMEM budget: double-buffered blocks + scratch, with headroom,
    # clamped to stay inside v7x's 64 MiB physical VMEM.
    block_bytes = 4 * (2 * N * D + 2 * K * Nk * Nk + 2 * tile_n * 1
                       + 2 * tile_n * D + 2 * M + 2 * M * D)
    vmem_limit = int(min(max(4 * block_bytes, 32 * 1024 * 1024),
                         64 * 1024 * 1024))

    return pl.pallas_call(
        _feature_aggregation_kernel,
        out_shape=jax.ShapeDtypeStruct((B, N, D), jnp.float32),
        grid_spec=pltpu.PrefetchScalarGridSpec(
            num_scalar_prefetch=1,                        # idx_smem -> SMEM
            grid=(B, n_tiles),
            in_specs=[
                pl.BlockSpec((None, 1, M), lambda b, nt, idx: (b, 0, 0)),          # indices (vector)
                pl.BlockSpec((None, N, D), lambda b, nt, idx: (b, 0, 0)),          # x
                pl.BlockSpec((None, K, Nk, Nk), lambda b, nt, idx: (b, 0, 0, 0)),  # adj
                pl.BlockSpec((None, tile_n, 1), lambda b, nt, idx: (b, nt, 0)),    # counts
            ],
            out_specs=pl.BlockSpec((None, tile_n, D), lambda b, nt, idx: (b, nt, 0)),
            scratch_shapes=[
                pltpu.VMEM((M, D), jnp.float32),   # gathered rows
                pltpu.VMEM((M, D), jnp.float32),   # adj @ gathered rows
            ],
        ),
        compiler_params=pltpu.CompilerParams(
            dimension_semantics=("parallel", "parallel"),
            vmem_limit_bytes=vmem_limit),
    )(idx_smem, idx_vmem, x32, adj32, cnt)


def _reference_forward(x, adj, batch_indices, indices):
    """Pure-JAX reference mirroring the PyTorch forward."""
    B, N, D = x.shape
    _, K, Nk = indices.shape
    sel = x[batch_indices, indices]                                   # (B, K, Nk, D)
    node_new = jnp.einsum('bkij,bkjd->bkid', adj, sel,
                          precision=jax.lax.Precision.HIGHEST
                          ).reshape(B, K * Nk, D)
    idx_flat = indices.reshape(B, K * Nk)
    b_idx = jnp.arange(B)[:, None]
    dict1 = jnp.zeros((B, N, D), x.dtype).at[b_idx, idx_flat].add(node_new)
    dict_refined = jnp.full((B, N), 1e-14, x.dtype).at[b_idx, idx_flat].add(1.0)
    return dict1 / dict_refined[..., None]


if __name__ == "__main__":
    key = jax.random.PRNGKey(0)
    B, N, D = 2, 64, 128     # batch, total nodes, feature dim (lane-dense D)
    K, Nk = 2, 8             # module's K and module's N (nodes per group)

    kx, ka, ki = jax.random.split(key, 3)
    x = jax.random.normal(kx, (B, N, D), dtype=jnp.float32)
    adj = jax.random.normal(ka, (B, K, Nk, Nk), dtype=jnp.float32)
    indices = jax.random.randint(ki, (B, K, Nk), 0, N, dtype=jnp.int32)
    batch_indices = jnp.arange(B, dtype=jnp.int32).reshape(B, 1, 1)

    out = feature_aggregation_forward(x, adj, batch_indices, indices)
    out = jax.block_until_ready(out)

    ref = _reference_forward(x, adj, batch_indices, indices)
    np.testing.assert_allclose(np.asarray(out), np.asarray(ref),
                               rtol=1e-3, atol=1e-4)
    print("KERNEL_OK")
</pallas_src>

<mosaic_0001>
module attributes {stable_mosaic.version = 11 : i64} {
  func.func @_feature_aggregation_kernel(%arg0: i32, %arg1: i32, %arg2: memref<2x16xi32, #tpu.memory_space<smem>>, %arg3: memref<1x1x16xi32, #tpu.memory_space<vmem>>, %arg4: memref<1x64x128xf32, #tpu.memory_space<vmem>>, %arg5: memref<1x2x8x8xf32, #tpu.memory_space<vmem>>, %arg6: memref<1x64x1xf32, #tpu.memory_space<vmem>>, %arg7: memref<1x64x128xf32, #tpu.memory_space<vmem>>, %arg8: memref<16x128xf32, #tpu.memory_space<vmem>>, %arg9: memref<16x128xf32, #tpu.memory_space<vmem>>) attributes {dimension_semantics = [#tpu.dimension_semantics<parallel>, #tpu.dimension_semantics<parallel>], iteration_bounds = array<i64: 2, 1>, scalar_prefetch = 1 : i64, scratch_operands = 2 : i64, tpu.core_type = #tpu.core_type<tc>, window_params = [{transform_indices = @transform_0, window_bounds = array<i64: 1, 1, 16>}, {transform_indices = @transform_1, window_bounds = array<i64: 1, 64, 128>}, {transform_indices = @transform_2, window_bounds = array<i64: 1, 2, 8, 8>}, {transform_indices = @transform_3, window_bounds = array<i64: 1, 64, 1>}, {transform_indices = @transform_4, window_bounds = array<i64: 1, 64, 128>}]} {
    %0 = arith.index_cast %arg0 : i32 to index
    %c0 = arith.constant 0 : index
    %1 = memref.load %arg2[%0, %c0] : memref<2x16xi32, #tpu.memory_space<smem>>
    %c0_0 = arith.constant 0 : index
    %2 = arith.index_cast %1 : i32 to index
    %c0_1 = arith.constant 0 : index
    %3 = vector.load %arg4[%c0_0, %2, %c0_1] : memref<1x64x128xf32, #tpu.memory_space<vmem>>, vector<1x1x128xf32>
    %4 = vector.shape_cast %3 : vector<1x1x128xf32> to vector<1x128xf32>
    %c0_2 = arith.constant 0 : index
    %c0_3 = arith.constant 0 : index
    %5 = vector.load %arg8[%c0_2, %c0_3] : memref<16x128xf32, #tpu.memory_space<vmem>>, vector<1x128xf32>
    tpu.vector_store %arg8[%c0_2, %c0_3], %4 {strides = array<i32>} : memref<16x128xf32, #tpu.memory_space<vmem>>, vector<1x128xf32>,
    %6 = arith.index_cast %arg0 : i32 to index
    %c1 = arith.constant 1 : index
    %7 = memref.load %arg2[%6, %c1] : memref<2x16xi32, #tpu.memory_space<smem>>
    %c0_4 = arith.constant 0 : index
    %8 = arith.index_cast %7 : i32 to index
    %c0_5 = arith.constant 0 : index
    %9 = vector.load %arg4[%c0_4, %8, %c0_5] : memref<1x64x128xf32, #tpu.memory_space<vmem>>, vector<1x1x128xf32>
    %10 = vector.shape_cast %9 : vector<1x1x128xf32> to vector<1x128xf32>
    %c1_6 = arith.constant 1 : index
    %c0_7 = arith.constant 0 : index
    %11 = vector.load %arg8[%c1_6, %c0_7] : memref<16x128xf32, #tpu.memory_space<vmem>>, vector<1x128xf32>
    tpu.vector_store %arg8[%c1_6, %c0_7], %10 {strides = array<i32>} : memref<16x128xf32, #tpu.memory_space<vmem>>, vector<1x128xf32>,
    %12 = arith.index_cast %arg0 : i32 to index
    %c2 = arith.constant 2 : index
    %13 = memref.load %arg2[%12, %c2] : memref<2x16xi32, #tpu.memory_space<smem>>
    %c0_8 = arith.constant 0 : index
    %14 = arith.index_cast %13 : i32 to index
    %c0_9 = arith.constant 0 : index
    %15 = vector.load %arg4[%c0_8, %14, %c0_9] : memref<1x64x128xf32, #tpu.memory_space<vmem>>, vector<1x1x128xf32>
    %16 = vector.shape_cast %15 : vector<1x1x128xf32> to vector<1x128xf32>
    %c2_10 = arith.constant 2 : index
    %c0_11 = arith.constant 0 : index
    %17 = vector.load %arg8[%c2_10, %c0_11] : memref<16x128xf32, #tpu.memory_space<vmem>>, vector<1x128xf32>
    tpu.vector_store %arg8[%c2_10, %c0_11], %16 {strides = array<i32>} : memref<16x128xf32, #tpu.memory_space<vmem>>, vector<1x128xf32>,
    %18 = arith.index_cast %arg0 : i32 to index
    %c3 = arith.constant 3 : index
    %19 = memref.load %arg2[%18, %c3] : memref<2x16xi32, #tpu.memory_space<smem>>
    %c0_12 = arith.constant 0 : index
    %20 = arith.index_cast %19 : i32 to index
    %c0_13 = arith.constant 0 : index
    %21 = vector.load %arg4[%c0_12, %20, %c0_13] : memref<1x64x128xf32, #tpu.memory_space<vmem>>, vector<1x1x128xf32>
    %22 = vector.shape_cast %21 : vector<1x1x128xf32> to vector<1x128xf32>
    %c3_14 = arith.constant 3 : index
    %c0_15 = arith.constant 0 : index
    %23 = vector.load %arg8[%c3_14, %c0_15] : memref<16x128xf32, #tpu.memory_space<vmem>>, vector<1x128xf32>
    tpu.vector_store %arg8[%c3_14, %c0_15], %22 {strides = array<i32>} : memref<16x128xf32, #tpu.memory_space<vmem>>, vector<1x128xf32>,
    %24 = arith.index_cast %arg0 : i32 to index
    %c4 = arith.constant 4 : index
    %25 = memref.load %arg2[%24, %c4] : memref<2x16xi32, #tpu.memory_space<smem>>
    %c0_16 = arith.constant 0 : index
    %26 = arith.index_cast %25 : i32 to index
    %c0_17 = arith.constant 0 : index
    %27 = vector.load %arg4[%c0_16, %26, %c0_17] : memref<1x64x128xf32, #tpu.memory_space<vmem>>, vector<1x1x128xf32>
    %28 = vector.shape_cast %27 : vector<1x1x128xf32> to vector<1x128xf32>
    %c4_18 = arith.constant 4 : index
    %c0_19 = arith.constant 0 : index
    %29 = vector.load %arg8[%c4_18, %c0_19] : memref<16x128xf32, #tpu.memory_space<vmem>>, vector<1x128xf32>
    tpu.vector_store %arg8[%c4_18, %c0_19], %28 {strides = array<i32>} : memref<16x128xf32, #tpu.memory_space<vmem>>, vector<1x128xf32>,
    %30 = arith.index_cast %arg0 : i32 to index
    %c5 = arith.constant 5 : index
    %31 = memref.load %arg2[%30, %c5] : memref<2x16xi32, #tpu.memory_space<smem>>
    %c0_20 = arith.constant 0 : index
    %32 = arith.index_cast %31 : i32 to index
    %c0_21 = arith.constant 0 : index
    %33 = vector.load %arg4[%c0_20, %32, %c0_21] : memref<1x64x128xf32, #tpu.memory_space<vmem>>, vector<1x1x128xf32>
    %34 = vector.shape_cast %33 : vector<1x1x128xf32> to vector<1x128xf32>
    %c5_22 = arith.constant 5 : index
    %c0_23 = arith.constant 0 : index
    %35 = vector.load %arg8[%c5_22, %c0_23] : memref<16x128xf32, #tpu.memory_space<vmem>>, vector<1x128xf32>
    tpu.vector_store %arg8[%c5_22, %c0_23], %34 {strides = array<i32>} : memref<16x128xf32, #tpu.memory_space<vmem>>, vector<1x128xf32>,
    %36 = arith.index_cast %arg0 : i32 to index
    %c6 = arith.constant 6 : index
    %37 = memref.load %arg2[%36, %c6] : memref<2x16xi32, #tpu.memory_space<smem>>
    %c0_24 = arith.constant 0 : index
    %38 = arith.index_cast %37 : i32 to index
    %c0_25 = arith.constant 0 : index
    %39 = vector.load %arg4[%c0_24, %38, %c0_25] : memref<1x64x128xf32, #tpu.memory_space<vmem>>, vector<1x1x128xf32>
    %40 = vector.shape_cast %39 : vector<1x1x128xf32> to vector<1x128xf32>
    %c6_26 = arith.constant 6 : index
    %c0_27 = arith.constant 0 : index
    %41 = vector.load %arg8[%c6_26, %c0_27] : memref<16x128xf32, #tpu.memory_space<vmem>>, vector<1x128xf32>
    tpu.vector_store %arg8[%c6_26, %c0_27], %40 {strides = array<i32>} : memref<16x128xf32, #tpu.memory_space<vmem>>, vector<1x128xf32>,
    %42 = arith.index_cast %arg0 : i32 to index
    %c7 = arith.constant 7 : index
    %43 = memref.load %arg2[%42, %c7] : memref<2x16xi32, #tpu.memory_space<smem>>
    %c0_28 = arith.constant 0 : index
    %44 = arith.index_cast %43 : i32 to index
    %c0_29 = arith.constant 0 : index
    %45 = vector.load %arg4[%c0_28, %44, %c0_29] : memref<1x64x128xf32, #tpu.memory_space<vmem>>, vector<1x1x128xf32>
    %46 = vector.shape_cast %45 : vector<1x1x128xf32> to vector<1x128xf32>
    %c7_30 = arith.constant 7 : index
    %c0_31 = arith.constant 0 : index
    %47 = vector.load %arg8[%c7_30, %c0_31] : memref<16x128xf32, #tpu.memory_space<vmem>>, vector<1x128xf32>
    tpu.vector_store %arg8[%c7_30, %c0_31], %46 {strides = array<i32>} : memref<16x128xf32, #tpu.memory_space<vmem>>, vector<1x128xf32>,
    %48 = arith.index_cast %arg0 : i32 to index
    %c8 = arith.constant 8 : index
    %49 = memref.load %arg2[%48, %c8] : memref<2x16xi32, #tpu.memory_space<smem>>
    %c0_32 = arith.constant 0 : index
    %50 = arith.index_cast %49 : i32 to index
    %c0_33 = arith.constant 0 : index
    %51 = vector.load %arg4[%c0_32, %50, %c0_33] : memref<1x64x128xf32, #tpu.memory_space<vmem>>, vector<1x1x128xf32>
    %52 = vector.shape_cast %51 : vector<1x1x128xf32> to vector<1x128xf32>
    %c8_34 = arith.constant 8 : index
    %c0_35 = arith.constant 0 : index
    %53 = vector.load %arg8[%c8_34, %c0_35] : memref<16x128xf32, #tpu.memory_space<vmem>>, vector<1x128xf32>
    tpu.vector_store %arg8[%c8_34, %c0_35], %52 {strides = array<i32>} : memref<16x128xf32, #tpu.memory_space<vmem>>, vector<1x128xf32>,
    %54 = arith.index_cast %arg0 : i32 to index
    %c9 = arith.constant 9 : index
    %55 = memref.load %arg2[%54, %c9] : memref<2x16xi32, #tpu.memory_space<smem>>
    %c0_36 = arith.constant 0 : index
    %56 = arith.index_cast %55 : i32 to index
    %c0_37 = arith.constant 0 : index
    %57 = vector.load %arg4[%c0_36, %56, %c0_37] : memref<1x64x128xf32, #tpu.memory_space<vmem>>, vector<1x1x128xf32>
    %58 = vector.shape_cast %57 : vector<1x1x128xf32> to vector<1x128xf32>
    %c9_38 = arith.constant 9 : index
    %c0_39 = arith.constant 0 : index
    %59 = vector.load %arg8[%c9_38, %c0_39] : memref<16x128xf32, #tpu.memory_space<vmem>>, vector<1x128xf32>
    tpu.vector_store %arg8[%c9_38, %c0_39], %58 {strides = array<i32>} : memref<16x128xf32, #tpu.memory_space<vmem>>, vector<1x128xf32>,
    %60 = arith.index_cast %arg0 : i32 to index
    %c10 = arith.constant 10 : index
    %61 = memref.load %arg2[%60, %c10] : memref<2x16xi32, #tpu.memory_space<smem>>
    %c0_40 = arith.constant 0 : index
    %62 = arith.index_cast %61 : i32 to index
    %c0_41 = arith.constant 0 : index
    %63 = vector.load %arg4[%c0_40, %62, %c0_41] : memref<1x64x128xf32, #tpu.memory_space<vmem>>, vector<1x1x128xf32>
    %64 = vector.shape_cast %63 : vector<1x1x128xf32> to vector<1x128xf32>
    %c10_42 = arith.constant 10 : index
    %c0_43 = arith.constant 0 : index
    %65 = vector.load %arg8[%c10_42, %c0_43] : memref<16x128xf32, #tpu.memory_space<vmem>>, vector<1x128xf32>
    tpu.vector_store %arg8[%c10_42, %c0_43], %64 {strides = array<i32>} : memref<16x128xf32, #tpu.memory_space<vmem>>, vector<1x128xf32>,
    %66 = arith.index_cast %arg0 : i32 to index
    %c11 = arith.constant 11 : index
    %67 = memref.load %arg2[%66, %c11] : memref<2x16xi32, #tpu.memory_space<smem>>
    %c0_44 = arith.constant 0 : index
    %68 = arith.index_cast %67 : i32 to index
    %c0_45 = arith.constant 0 : index
    %69 = vector.load %arg4[%c0_44, %68, %c0_45] : memref<1x64x128xf32, #tpu.memory_space<vmem>>, vector<1x1x128xf32>
    %70 = vector.shape_cast %69 : vector<1x1x128xf32> to vector<1x128xf32>
    %c11_46 = arith.constant 11 : index
    %c0_47 = arith.constant 0 : index
    %71 = vector.load %arg8[%c11_46, %c0_47] : memref<16x128xf32, #tpu.memory_space<vmem>>, vector<1x128xf32>
    tpu.vector_store %arg8[%c11_46, %c0_47], %70 {strides = array<i32>} : memref<16x128xf32, #tpu.memory_space<vmem>>, vector<1x128xf32>,
    %72 = arith.index_cast %arg0 : i32 to index
    %c12 = arith.constant 12 : index
    %73 = memref.load %arg2[%72, %c12] : memref<2x16xi32, #tpu.memory_space<smem>>
    %c0_48 = arith.constant 0 : index
    %74 = arith.index_cast %73 : i32 to index
    %c0_49 = arith.constant 0 : index
    %75 = vector.load %arg4[%c0_48, %74, %c0_49] : memref<1x64x128xf32, #tpu.memory_space<vmem>>, vector<1x1x128xf32>
    %76 = vector.shape_cast %75 : vector<1x1x128xf32> to vector<1x128xf32>
    %c12_50 = arith.constant 12 : index
    %c0_51 = arith.constant 0 : index
    %77 = vector.load %arg8[%c12_50, %c0_51] : memref<16x128xf32, #tpu.memory_space<vmem>>, vector<1x128xf32>
    tpu.vector_store %arg8[%c12_50, %c0_51], %76 {strides = array<i32>} : memref<16x128xf32, #tpu.memory_space<vmem>>, vector<1x128xf32>,
    %78 = arith.index_cast %arg0 : i32 to index
    %c13 = arith.constant 13 : index
    %79 = memref.load %arg2[%78, %c13] : memref<2x16xi32, #tpu.memory_space<smem>>
    %c0_52 = arith.constant 0 : index
    %80 = arith.index_cast %79 : i32 to index
    %c0_53 = arith.constant 0 : index
    %81 = vector.load %arg4[%c0_52, %80, %c0_53] : memref<1x64x128xf32, #tpu.memory_space<vmem>>, vector<1x1x128xf32>
    %82 = vector.shape_cast %81 : vector<1x1x128xf32> to vector<1x128xf32>
    %c13_54 = arith.constant 13 : index
    %c0_55 = arith.constant 0 : index
    %83 = vector.load %arg8[%c13_54, %c0_55] : memref<16x128xf32, #tpu.memory_space<vmem>>, vector<1x128xf32>
    tpu.vector_store %arg8[%c13_54, %c0_55], %82 {strides = array<i32>} : memref<16x128xf32, #tpu.memory_space<vmem>>, vector<1x128xf32>,
    %84 = arith.index_cast %arg0 : i32 to index
    %c14 = arith.constant 14 : index
    %85 = memref.load %arg2[%84, %c14] : memref<2x16xi32, #tpu.memory_space<smem>>
    %c0_56 = arith.constant 0 : index
    %86 = arith.index_cast %85 : i32 to index
    %c0_57 = arith.constant 0 : index
    %87 = vector.load %arg4[%c0_56, %86, %c0_57] : memref<1x64x128xf32, #tpu.memory_space<vmem>>, vector<1x1x128xf32>
    %88 = vector.shape_cast %87 : vector<1x1x128xf32> to vector<1x128xf32>
    %c14_58 = arith.constant 14 : index
    %c0_59 = arith.constant 0 : index
    %89 = vector.load %arg8[%c14_58, %c0_59] : memref<16x128xf32, #tpu.memory_space<vmem>>, vector<1x128xf32>
    tpu.vector_store %arg8[%c14_58, %c0_59], %88 {strides = array<i32>} : memref<16x128xf32, #tpu.memory_space<vmem>>, vector<1x128xf32>,
    %90 = arith.index_cast %arg0 : i32 to index
    %c15 = arith.constant 15 : index
    %91 = memref.load %arg2[%90, %c15] : memref<2x16xi32, #tpu.memory_space<smem>>
    %c0_60 = arith.constant 0 : index
    %92 = arith.index_cast %91 : i32 to index
    %c0_61 = arith.constant 0 : index
    %93 = vector.load %arg4[%c0_60, %92, %c0_61] : memref<1x64x128xf32, #tpu.memory_space<vmem>>, vector<1x1x128xf32>
    %94 = vector.shape_cast %93 : vector<1x1x128xf32> to vector<1x128xf32>
    %c15_62 = arith.constant 15 : index
    %c0_63 = arith.constant 0 : index
    %95 = vector.load %arg8[%c15_62, %c0_63] : memref<16x128xf32, #tpu.memory_space<vmem>>, vector<1x128xf32>
    tpu.vector_store %arg8[%c15_62, %c0_63], %94 {strides = array<i32>} : memref<16x128xf32, #tpu.memory_space<vmem>>, vector<1x128xf32>,
    %c0_64 = arith.constant 0 : index
    %c0_65 = arith.constant 0 : index
    %c0_66 = arith.constant 0 : index
    %c0_67 = arith.constant 0 : index
    %96 = vector.load %arg5[%c0_64, %c0_65, %c0_66, %c0_67] : memref<1x2x8x8xf32, #tpu.memory_space<vmem>>, vector<1x1x8x8xf32>
    %97 = vector.shape_cast %96 : vector<1x1x8x8xf32> to vector<8x8xf32>
    %c0_68 = arith.constant 0 : index
    %c0_69 = arith.constant 0 : index
    %98 = vector.load %arg8[%c0_68, %c0_69] : memref<16x128xf32, #tpu.memory_space<vmem>>, vector<8x128xf32>
    %cst = arith.constant dense<0.000000e+00> : vector<8x128xf32>
    %99 = tpu.matmul %97, %98, %cst {dimension_numbers = #tpu.dot_dimension_numbers<[1], [0], [0], [1], [0, 0, 1, 1], [], []>, precision = #tpu.contract_precision<fp32>} : vector<8x8xf32>, vector<8x128xf32>, vector<8x128xf32> -> vector<8x128xf32>
    %c0_70 = arith.constant 0 : index
    %c0_71 = arith.constant 0 : index
    %100 = vector.load %arg9[%c0_70, %c0_71] : memref<16x128xf32, #tpu.memory_space<vmem>>, vector<8x128xf32>
    tpu.vector_store %arg9[%c0_70, %c0_71], %99 {strides = array<i32>} : memref<16x128xf32, #tpu.memory_space<vmem>>, vector<8x128xf32>,
    %c0_72 = arith.constant 0 : index
    %c1_73 = arith.constant 1 : index
    %c0_74 = arith.constant 0 : index
    %c0_75 = arith.constant 0 : index
    %101 = vector.load %arg5[%c0_72, %c1_73, %c0_74, %c0_75] : memref<1x2x8x8xf32, #tpu.memory_space<vmem>>, vector<1x1x8x8xf32>
    %102 = vector.shape_cast %101 : vector<1x1x8x8xf32> to vector<8x8xf32>
    %c8_76 = arith.constant 8 : index
    %c0_77 = arith.constant 0 : index
    %103 = vector.load %arg8[%c8_76, %c0_77] : memref<16x128xf32, #tpu.memory_space<vmem>>, vector<8x128xf32>
    %cst_78 = arith.constant dense<0.000000e+00> : vector<8x128xf32>
    %104 = tpu.matmul %102, %103, %cst_78 {dimension_numbers = #tpu.dot_dimension_numbers<[1], [0], [0], [1], [0, 0, 1, 1], [], []>, precision = #tpu.contract_precision<fp32>} : vector<8x8xf32>, vector<8x128xf32>, vector<8x128xf32> -> vector<8x128xf32>
    %c8_79 = arith.constant 8 : index
    %c0_80 = arith.constant 0 : index
    %105 = vector.load %arg9[%c8_79, %c0_80] : memref<16x128xf32, #tpu.memory_space<vmem>>, vector<8x128xf32>
    tpu.vector_store %arg9[%c8_79, %c0_80], %104 {strides = array<i32>} : memref<16x128xf32, #tpu.memory_space<vmem>>, vector<8x128xf32>,
    %c64_i32 = arith.constant 64 : i32
    %106 = arith.muli %arg1, %c64_i32 : i32
    %107 = tpu.iota {dimensions = array<i32: 0>} : vector<64x16xi32>
    %108 = vector.broadcast %106 : i32 to vector<64x16xi32>
    %109 = arith.addi %108, %107 : vector<64x16xi32>
    %c0_81 = arith.constant 0 : index
    %c0_82 = arith.constant 0 : index
    %c0_83 = arith.constant 0 : index
    %110 = vector.load %arg3[%c0_81, %c0_82, %c0_83] : memref<1x1x16xi32, #tpu.memory_space<vmem>>, vector<1x1x16xi32>
    %111 = vector.shape_cast %110 : vector<1x1x16xi32> to vector<1x16xi32>
    %112 = vector.broadcast %111 : vector<1x16xi32> to vector<64x16xi32>
    %113 = arith.cmpi eq, %109, %112 : vector<64x16xi32>
    %114 = arith.extui %113 : vector<64x16xi1> to vector<64x16xi32>
    %115 = arith.sitofp %114 : vector<64x16xi32> to vector<64x16xf32>
    %c0_84 = arith.constant 0 : index
    %c0_85 = arith.constant 0 : index
    %116 = vector.load %arg9[%c0_84, %c0_85] : memref<16x128xf32, #tpu.memory_space<vmem>>, vector<16x128xf32>
    %cst_86 = arith.constant dense<0.000000e+00> : vector<64x128xf32>
    %117 = tpu.matmul %115, %116, %cst_86 {dimension_numbers = #tpu.dot_dimension_numbers<[1], [0], [0], [1], [0, 0, 1, 1], [], []>, precision = #tpu.contract_precision<fp32>} : vector<64x16xf32>, vector<16x128xf32>, vector<64x128xf32> -> vector<64x128xf32>
    %c0_87 = arith.constant 0 : index
    %c0_88 = arith.constant 0 : index
    %c0_89 = arith.constant 0 : index
    %118 = vector.load %arg6[%c0_87, %c0_88, %c0_89] : memref<1x64x1xf32, #tpu.memory_space<vmem>>, vector<1x64x1xf32>
    %119 = vector.shape_cast %118 : vector<1x64x1xf32> to vector<64x1xf32>
    %120 = tpu.reciprocal %119 : vector<64x1xf32> -> vector<64x1xf32>
    %121 = vector.broadcast %120 : vector<64x1xf32> to vector<64x128xf32>
    %122 = arith.mulf %117, %121 : vector<64x128xf32>
    %c0_90 = arith.constant 0 : index
    %c0_91 = arith.constant 0 : index
    %c0_92 = arith.constant 0 : index
    %123 = vector.load %arg7[%c0_90, %c0_91, %c0_92] : memref<1x64x128xf32, #tpu.memory_space<vmem>>, vector<1x64x128xf32>
    %124 = vector.shape_cast %123 : vector<1x64x128xf32> to vector<64x128xf32>
    %125 = vector.shape_cast %122 : vector<64x128xf32> to vector<1x64x128xf32>
    tpu.vector_store %arg7[%c0_90, %c0_91, %c0_92], %125 {strides = array<i32>} : memref<1x64x128xf32, #tpu.memory_space<vmem>>, vector<1x64x128xf32>,
    return
  }
  func.func @transform_0(%arg0: i32, %arg1: i32, %arg2: memref<2x16xi32, #tpu.memory_space<smem>>) -> (i32, i32, i32) {
    %c0_i32 = arith.constant 0 : i32
    %c0_i32_0 = arith.constant 0 : i32
    %c0_i32_1 = arith.constant 0 : i32
    return %arg0, %c0_i32, %c0_i32_0 : i32, i32, i32
  }
  func.func @transform_1(%arg0: i32, %arg1: i32, %arg2: memref<2x16xi32, #tpu.memory_space<smem>>) -> (i32, i32, i32) {
    %c0_i32 = arith.constant 0 : i32
    %c0_i32_0 = arith.constant 0 : i32
    %c0_i32_1 = arith.constant 0 : i32
    return %arg0, %c0_i32, %c0_i32_0 : i32, i32, i32
  }
  func.func @transform_2(%arg0: i32, %arg1: i32, %arg2: memref<2x16xi32, #tpu.memory_space<smem>>) -> (i32, i32, i32, i32) {
    %c0_i32 = arith.constant 0 : i32
    %c0_i32_0 = arith.constant 0 : i32
    %c0_i32_1 = arith.constant 0 : i32
    %c0_i32_2 = arith.constant 0 : i32
    return %arg0, %c0_i32, %c0_i32_0, %c0_i32_1 : i32, i32, i32, i32
  }
  func.func @transform_3(%arg0: i32, %arg1: i32, %arg2: memref<2x16xi32, #tpu.memory_space<smem>>) -> (i32, i32, i32) {
    %c0_i32 = arith.constant 0 : i32
    %c0_i32_0 = arith.constant 0 : i32
    return %arg0, %arg1, %c0_i32 : i32, i32, i32
  }
  func.func @transform_4(%arg0: i32, %arg1: i32, %arg2: memref<2x16xi32, #tpu.memory_space<smem>>) -> (i32, i32, i32) {
    %c0_i32 = arith.constant 0 : i32
    %c0_i32_0 = arith.constant 0 : i32
    return %arg0, %arg1, %c0_i32 : i32, i32, i32
  }
}

</mosaic_0001>

<llo_original>
// kernel: tpu_custom_call.1
$region0: #{tpu_custom_call.1}
  #allocation0 [shape = 'u32[]', space=smem, size = 0x4, offset = 0x4, fixed_abs, tag = 'smem constant byte address 0x4 - core index']
  #allocation1 [shape = 'u32[144,128]{1,0:T(1,128)}', space=vmem, size = 0x12000, scoped, tag = 'internal scratch']
  #allocation2 [shape = 'f32[16,128]{1,0:T(8,128)}', space=vmem, size = 0x2000, scoped, tag = 'scratch operand']
  #allocation3 [shape = 'f32[16,128]{1,0:T(8,128)}', space=vmem, size = 0x2000, scoped, tag = 'scratch operand']
  #allocation4 [shape = 's32[1]{0}', space=sflag, size = 0x4, scoped, tag = 'scoped memory for tpu_custom_call.1']
  #allocation5 [shape = 'u8[1024]{0}', space=smem, size = 0x400, scoped, tag = 'prefetched SMEM operand 0']
  %s0 = inlined_call_operand.vmem [shape: s32[2,16], index: 0, kind: input, shape index: {}]
  %s1 = inlined_call_operand.vmem [shape: s32[2,1,16], index: 1, kind: input, shape index: {}]
  %s2 = inlined_call_operand.vmem [shape: f32[2,64,128], index: 2, kind: input, shape index: {}]
  %s3 = inlined_call_operand.hbm [shape: f32[2,2,8,8], index: 3, kind: input, shape index: {}]
  %s4 = inlined_call_operand.vmem [shape: f32[2,64,1], index: 4, kind: input, shape index: {}]
  %s5 = inlined_call_operand.hbm [shape: f32[2,64,128], index: 5, kind: output, shape index: {}]
  %s6 = sld [smem:[#allocation0]]
  $region53: #{tpu_custom_call.1} parent=0
    _
  %s8 = ssub.s32 1, %s6
  %s9 = scalar_select 0, %s8, %s6
  %s10 = sshll.u32 %s0, 4
  %s11 = int_to_ptr.vmem [resolvable:$true] %s10
  %13 = dma.vmem_to_smem %s11, 32, [#allocation5], [#allocation4]
  %14 = dma.done [#allocation4], 32
  %15 = sfence
  $region1: #{tpu_custom_call.1} parent=0
    #allocation6 [shape = 'u8[16384]{0}', space=vmem, size = 0x4000, scoped, tag = 'input window, operand 3']
    #allocation7 [shape = 's32[2]{0}', space=sflag, size = 0x8, scoped, tag = 'scoped memory for tpu_custom_call.1']
    #allocation8 [shape = 's32[2]{0}', space=sflag, size = 0x8, scoped, tag = 'scoped memory for tpu_custom_call.1']
    #allocation9 [shape = 'u8[65536]{0}', space=vmem, size = 0x10000, scoped, tag = 'output window, operand 0']
    %16 = vsyncpa [#allocation7], 0
    %s17 = scalar_lea.sflag [#allocation7], 1
    %18 = vsyncpa %s17, 0
    %19 = vsyncpa [#allocation8], 0
    %s20 = scalar_lea.sflag [#allocation8], 1
    %21 = vsyncpa %s20, 0
    loop: start=0, step=1, limit=4
    $region2: #{tpu_custom_call.1} parent=1 // loop_pre_header
      _
    $region3: #{tpu_custom_call.1} parent=1 // loop_header
      %s23 = sphi 0, %s27
      %p24 = scmp.ge.s32.totalorder %s23, 4
      %s30 = sphi 0, %s42
      %s31 = sphi 0, %s38
      %s32 = sphi 0, %s30
      %s33 = sphi 0, %s31
      %s34 = sphi 0, %s32
      %s35 = sphi 0, %s33
      %s45 = sphi 0, %s47
      %s48 = sphi 0, %s45
      %s49 = sphi 0, %s48
      %s65 = sphi 0, %s49
      %s71 = sphi 0, %s73
      %s74 = sphi 0, %s71
      %s75 = sphi 0, %s74
      %s91 = sphi 0, %s75
      %s97 = sphi 0, %s99
      %s100 = sphi 0, %s97
      %s101 = sphi 0, %s100
      %s117 = sphi 0, %s101
      %s125 = sphi 0, %s127
      %s128 = sphi 0, %s125
      %s129 = sphi 0, %s128
      %s145 = sphi 0, %s129
      %s153 = sphi 0, %s155
      %s156 = sphi 0, %s153
      %s157 = sphi 0, %s156
      %s173 = sphi 0, %s157
    $region4: #{tpu_custom_call.1} parent=1 // loop_header_branch
      %26 = sbr.rel (%p24) target = $region8
    $region5: #{tpu_custom_call.1} parent=1 // loop_body
      %s28 = ssub.s32 %s23, 1
      %s29 = ssub.s32 %s23, 2
      %s36 = sadd.s32 1, %s31
      %p37 = scmp.ge.s32.totalorder %s36, 1
      %s38 = scalar_select %p37, 0, %s36
      %s39 = sadd.s32 1, %s30
      %s40 = scalar_select %p37, %s39, %s30
      %p41 = scmp.ge.s32.totalorder %s40, 2
      %s42 = scalar_select %p41, 0, %s40
      %s43 = ssub.s32 %s30, %s42
      %p44 = scmp.eq.s32.totalorder %s43, 0
      %s46 = sadd.s32 %s45, 1
      %s47 = scalar_select %p44, %s45, %s46
      %p50 = pneg %p44
      %p51 = scmp.eq.s32.totalorder %s23, 1
      %p52 = por %p50, %p51
      %p53 = scmp.ne.s32.totalorder %s45, %s48
      %p54 = scmp.eq.s32.totalorder %s23, 0
      %p55 = por %p53, %p54
      %p56 = scmp.ne.s32.totalorder %s45, %s48
      %p57 = scmp.eq.s32.totalorder %s28, 1
      %p58 = por %p56, %p57
      %p59 = scmp.ne.s32.totalorder %s48, %s49
      %p60 = scmp.eq.s32.totalorder %s28, 0
      %p61 = por %p59, %p60
      %p62 = scmp.ne.s32.totalorder %s48, %s49
      %p63 = scmp.eq.s32.totalorder %s29, 1
      %p64 = por %p62, %p63
      %p66 = scmp.ne.s32.totalorder %s49, %s65
      %p67 = scmp.eq.s32.totalorder %s29, 0
      %p68 = por %p66, %p67
      %s69 = ssub.s32 %s30, %s42
      %p70 = scmp.eq.s32.totalorder %s69, 0
      %s72 = sadd.s32 %s71, 1
      %s73 = scalar_select %p70, %s71, %s72
      %p76 = pneg %p70
      %p77 = scmp.eq.s32.totalorder %s23, 1
      %p78 = por %p76, %p77
      %p79 = scmp.ne.s32.totalorder %s71, %s74
      %p80 = scmp.eq.s32.totalorder %s23, 0
      %p81 = por %p79, %p80
      %p82 = scmp.ne.s32.totalorder %s71, %s74
      %p83 = scmp.eq.s32.totalorder %s28, 1
      %p84 = por %p82, %p83
      %p85 = scmp.ne.s32.totalorder %s74, %s75
      %p86 = scmp.eq.s32.totalorder %s28, 0
      %p87 = por %p85, %p86
      %p88 = scmp.ne.s32.totalorder %s74, %s75
      %p89 = scmp.eq.s32.totalorder %s29, 1
      %p90 = por %p88, %p89
      %p92 = scmp.ne.s32.totalorder %s75, %s91
      %p93 = scmp.eq.s32.totalorder %s29, 0
      %p94 = por %p92, %p93
      %s95 = ssub.s32 %s30, %s42
      %p96 = scmp.eq.s32.totalorder %s95, 0
      %s98 = sadd.s32 %s97, 1
      %s99 = scalar_select %p96, %s97, %s98
      %p102 = pneg %p96
      %p103 = scmp.eq.s32.totalorder %s23, 1
      %p104 = por %p102, %p103
      %p105 = scmp.ne.s32.totalorder %s97, %s100
      %p106 = scmp.eq.s32.totalorder %s23, 0
      %p107 = por %p105, %p106
      %p108 = scmp.ne.s32.totalorder %s97, %s100
      %p109 = scmp.eq.s32.totalorder %s28, 1
      %p110 = por %p108, %p109
      %p111 = scmp.ne.s32.totalorder %s100, %s101
      %p112 = scmp.eq.s32.totalorder %s28, 0
      %p113 = por %p111, %p112
      %p114 = scmp.ne.s32.totalorder %s100, %s101
      %p115 = scmp.eq.s32.totalorder %s29, 1
      %p116 = por %p114, %p115
      %p118 = scmp.ne.s32.totalorder %s101, %s117
      %p119 = scmp.eq.s32.totalorder %s29, 0
      %p120 = por %p118, %p119
      %s121 = ssub.s32 %s30, %s42
      %s122 = ssub.s32 %s31, %s38
      %s123 = sor.u32 %s121, %s122
      %p124 = scmp.eq.s32.totalorder %s123, 0
      %s126 = sadd.s32 %s125, 1
      %s127 = scalar_select %p124, %s125, %s126
      %p130 = pneg %p124
      %p131 = scmp.eq.s32.totalorder %s23, 1
      %p132 = por %p130, %p131
      %p133 = scmp.ne.s32.totalorder %s125, %s128
      %p134 = scmp.eq.s32.totalorder %s23, 0
      %p135 = por %p133, %p134
      %p136 = scmp.ne.s32.totalorder %s125, %s128
      %p137 = scmp.eq.s32.totalorder %s28, 1
      %p138 = por %p136, %p137
      %p139 = scmp.ne.s32.totalorder %s128, %s129
      %p140 = scmp.eq.s32.totalorder %s28, 0
      %p141 = por %p139, %p140
      %p142 = scmp.ne.s32.totalorder %s128, %s129
      %p143 = scmp.eq.s32.totalorder %s29, 1
      %p144 = por %p142, %p143
      %p146 = scmp.ne.s32.totalorder %s129, %s145
      %p147 = scmp.eq.s32.totalorder %s29, 0
      %p148 = por %p146, %p147
      %s149 = ssub.s32 %s30, %s42
      %s150 = ssub.s32 %s31, %s38
      %s151 = sor.u32 %s149, %s150
      %p152 = scmp.eq.s32.totalorder %s151, 0
      %s154 = sadd.s32 %s153, 1
      %s155 = scalar_select %p152, %s153, %s154
      %p158 = pneg %p152
      %p159 = scmp.eq.s32.totalorder %s23, 1
      %p160 = por %p158, %p159
      %p161 = scmp.ne.s32.totalorder %s153, %s156
      %p162 = scmp.eq.s32.totalorder %s23, 0
      %p163 = por %p161, %p162
      %p164 = scmp.ne.s32.totalorder %s153, %s156
      %p165 = scmp.eq.s32.totalorder %s28, 1
      %p166 = por %p164, %p165
      %p167 = scmp.ne.s32.totalorder %s156, %s157
      %p168 = scmp.eq.s32.totalorder %s28, 0
      %p169 = por %p167, %p168
      %p170 = scmp.ne.s32.totalorder %s156, %s157
      %p171 = scmp.eq.s32.totalorder %s29, 1
      %p172 = por %p170, %p171
      %p174 = scmp.ne.s32.totalorder %s157, %s173
      %p175 = scmp.eq.s32.totalorder %s29, 0
      %p176 = por %p174, %p175
      %p177 = scmp.le.s32.totalorder 1, %s23
      %p178 = scmp.lt.s32.totalorder %s23, 3
      %p179 = pnand %p177, %p178
      %p180 = pneg %p179
      // Predicated region
      $region9: #{tpu_custom_call.1} parent=5 // pred_check
        _
      $region10: #{tpu_custom_call.1} parent=5 // pred_check_branch
        %182 = sbr.rel (%p179) target = $region12
      $region11: #{tpu_custom_call.1} parent=5 // pred_region
        %s183 = ssub.s32 %s23, 1
      $region12: #{tpu_custom_call.1} parent=5 // pred_fallthru
        _
      %p184 = scmp.lt.s32.totalorder %s23, 2
      // Predicated region
      $region13: #{tpu_custom_call.1} parent=5 // pred_check
        %p185 = pneg %p184
      $region14: #{tpu_custom_call.1} parent=5 // pred_check_branch
        %187 = sbr.rel (%p185) target = $region16
      $region15: #{tpu_custom_call.1} parent=5 // pred_region
        // Predicated region
        $region17: #{tpu_custom_call.1} parent=15 // pred_check
          %p188 = pneg %p55
        $region18: #{tpu_custom_call.1} parent=15 // pred_check_branch
          %190 = sbr.rel (%p188) target = $region20
        $region19: #{tpu_custom_call.1} parent=15 // pred_region
          %p191 = scmp.lt.s32.totalorder %s30, 1
          %s192 = scalar_select %p191, %s30, 1
          %s193 = scalar_lea.vmem %s1, %s192
        $region20: #{tpu_custom_call.1} parent=15 // pred_fallthru
          _
        // Predicated region
        $region21: #{tpu_custom_call.1} parent=15 // pred_check
          %p194 = pneg %p81
        $region22: #{tpu_custom_call.1} parent=15 // pred_check_branch
          %196 = sbr.rel (%p194) target = $region24
        $region23: #{tpu_custom_call.1} parent=15 // pred_region
          %p197 = scmp.lt.s32.totalorder %s30, 1
          %s198 = scalar_select %p197, %s30, 1
          %s199 = smul.addr %s198, 8
          %s200 = smul.addr %s199, 8
          %s201 = scalar_lea.vmem %s2, %s200
        $region24: #{tpu_custom_call.1} parent=15 // pred_fallthru
          _
        // Predicated region
        $region25: #{tpu_custom_call.1} parent=15 // pred_check
          %p202 = pneg %p107
        $region26: #{tpu_custom_call.1} parent=15 // pred_check_branch
          %204 = sbr.rel (%p202) target = $region28
        $region27: #{tpu_custom_call.1} parent=15 // pred_region
          %s205 = sand.u32 %s97, 1
          %s206 = scalar_lea.sflag [#allocation7], %s205
          %s207 = sand.u32 %s97, 1
          %s208 = smul.addr %s207, 16
          %s209 = scalar_lea.vmem [#allocation6], %s208
          %s211 = ssub.s32 256, 256
          %212 = vsyncadd %s206, %s211
          %s213 = smul.addr %s30, 2
          %s214 = smul.addr %s213, 128
          %s215 = scalar_lea.hbm %s3, %s214
          %s216 = sshll.u32 %s209, 4
          %s217 = int_to_ptr.vmem [resolvable:$true] %s216
          %222 = dma.hbm_to_vmem [thread:$0]  %s215, 256, %s217, %s206, 128, 128, 8
        $region28: #{tpu_custom_call.1} parent=15 // pred_fallthru
          _
        // Predicated region
        $region29: #{tpu_custom_call.1} parent=15 // pred_check
          %p223 = pneg %p135
        $region30: #{tpu_custom_call.1} parent=15 // pred_check_branch
          %225 = sbr.rel (%p223) target = $region32
        $region31: #{tpu_custom_call.1} parent=15 // pred_region
          %s226 = smul.u32 8, %s31
          %p227 = scmp.lt.s32.totalorder %s30, 1
          %s228 = scalar_select %p227, %s30, 1
          %p229 = scmp.lt.s32.totalorder %s226, 7
          %s230 = scalar_select %p229, %s226, 7
          %s231 = smul.addr %s228, 8
          %s232 = sadd.s32 %s230, %s231
          %s233 = smul.addr %s232, 8
          %s234 = scalar_lea.vmem %s4, %s233
          %s235 = smul.u32 8, %s31
        $region32: #{tpu_custom_call.1} parent=15 // pred_fallthru
          _
      $region16: #{tpu_custom_call.1} parent=5 // pred_fallthru
        _
      %p236 = scmp.le.s32.totalorder 1, %s23
      %p237 = scmp.lt.s32.totalorder %s23, 3
      %p238 = pnand %p236, %p237
      %p239 = pneg %p238
      // Predicated region
      $region33: #{tpu_custom_call.1} parent=5 // pred_check
        _
      $region34: #{tpu_custom_call.1} parent=5 // pred_check_branch
        %241 = sbr.rel (%p238) target = $region36
      $region35: #{tpu_custom_call.1} parent=5 // pred_region
        %s242 = ssub.s32 %s23, 1
        %s243 = sand.u32 %s100, 1
        %s244 = scalar_lea.sflag [#allocation7], %s243
        %s245 = sand.u32 %s100, 1
        %s246 = smul.addr %s245, 16
        %s247 = scalar_lea.vmem [#allocation6], %s246
        // Predicated region
        $region37: #{tpu_custom_call.1} parent=35 // pred_check
          %p248 = pneg %p113
        $region38: #{tpu_custom_call.1} parent=35 // pred_check_branch
          %250 = sbr.rel (%p248) target = $region40
        $region39: #{tpu_custom_call.1} parent=35 // pred_region
          %251 = dma.done %s244, 256
        $region40: #{tpu_custom_call.1} parent=35 // pred_fallthru
          _
        %p252 = scmp.lt.s32.totalorder %s32, 1
        %s253 = scalar_select %p252, %s32, 1
        %s254 = scalar_lea.vmem %s1, %s253
        %p255 = pneg %p61
        %p256 = pneg %p58
        %p257 = scmp.lt.s32.totalorder %s32, 1
        %s258 = scalar_select %p257, %s32, 1
        %s259 = smul.addr %s258, 8
        %s260 = smul.addr %s259, 8
        %s261 = scalar_lea.vmem %s2, %s260
        %p262 = pneg %p87
        %p263 = pneg %p84
        %s264 = sand.u32 %s100, 1
        %s265 = scalar_lea.sflag [#allocation7], %s264
        %s266 = sand.u32 %s100, 1
        %s267 = smul.addr %s266, 16
        %s268 = scalar_lea.vmem [#allocation6], %s267
        %p269 = pneg %p113
        %p270 = pneg %p110
        %s271 = smul.u32 8, %s33
        %p272 = scmp.lt.s32.totalorder %s32, 1
        %s273 = scalar_select %p272, %s32, 1
        %p274 = scmp.lt.s32.totalorder %s271, 7
        %s275 = scalar_select %p274, %s271, 7
        %s276 = smul.addr %s273, 8
        %s277 = sadd.s32 %s275, %s276
        %s278 = smul.addr %s277, 8
        %s279 = scalar_lea.vmem %s4, %s278
        %p280 = pneg %p141
        %p281 = pneg %p138
        %p282 = pneg %p169
        %p283 = pneg %p166
        %s284 = sand.u32 %s156, 1
        %s285 = scalar_lea.sflag [#allocation8], %s284
        %s286 = sand.u32 %s156, 1
        %s287 = smul.addr %s286, 64
        %s288 = scalar_lea.vmem [#allocation9], %s287
        %p289 = scmp.lt.s32.totalorder %s32, 1
        %s290 = scalar_select %p289, %s32, 1
        %s291 = scalar_lea.vmem %s1, %s290
        %p292 = scmp.lt.s32.totalorder %s32, 1
        %s293 = scalar_select %p292, %s32, 1
        %s294 = smul.addr %s293, 8
        %s295 = smul.addr %s294, 8
        %s296 = scalar_lea.vmem %s2, %s295
        %s297 = smul.u32 8, %s33
        %p298 = scmp.lt.s32.totalorder %s32, 1
        %s299 = scalar_select %p298, %s32, 1
        %p300 = scmp.lt.s32.totalorder %s297, 7
        %s301 = scalar_select %p300, %s297, 7
        %s302 = smul.addr %s299, 8
        %s303 = sadd.s32 %s301, %s302
        %s304 = smul.addr %s303, 8
        %s305 = scalar_lea.vmem %s4, %s304
        %s306 = smul.u32 8, %s33
        %s307 = smul.u32 8, %s33
        %s308 = smul.u32 %s32, 128
        %s309 = sld [smem:[#allocation5 + %s308]]
        %s310 = scalar_lea.vmem %s296, %s309
        %v311 = vld [vmem:[%s310] sm:$0x1]
        %312 = vst [vmem:[#allocation2] sm:$0x1] %v311
        %s313 = sadd.s32 %s308, 1
        %s314 = sld [smem:[#allocation5 + %s313]]
        %s315 = scalar_lea.vmem %s296, %s314
        %v316 = vld [vmem:[%s315] sm:$0x1]
        %317 = vst [vmem:[#allocation2 + $0x1] sm:$0x1] %v316
        %s318 = sadd.s32 %s308, 2
        %s319 = sld [smem:[#allocation5 + %s318]]
        %s320 = scalar_lea.vmem %s296, %s319
        %v321 = vld [vmem:[%s320] sm:$0x1]
        %322 = vst [vmem:[#allocation2 + $0x2] sm:$0x1] %v321
        %s323 = sadd.s32 %s308, 3
        %s324 = sld [smem:[#allocation5 + %s323]]
        %s325 = scalar_lea.vmem %s296, %s324
        %v326 = vld [vmem:[%s325] sm:$0x1]
        %327 = vst [vmem:[#allocation2 + $0x3] sm:$0x1] %v326
        %s328 = sadd.s32 %s308, 4
        %s329 = sld [smem:[#allocation5 + %s328]]
        %s330 = scalar_lea.vmem %s296, %s329
        %v331 = vld [vmem:[%s330] sm:$0x1]
        %332 = vst [vmem:[#allocation2 + $0x4] sm:$0x1] %v331
        %s333 = sadd.s32 %s308, 5
        %s334 = sld [smem:[#allocation5 + %s333]]
        %s335 = scalar_lea.vmem %s296, %s334
        %v336 = vld [vmem:[%s335] sm:$0x1]
        %337 = vst [vmem:[#allocation2 + $0x5] sm:$0x1] %v336
        %s338 = sadd.s32 %s308, 6
        %s339 = sld [smem:[#allocation5 + %s338]]
        %s340 = scalar_lea.vmem %s296, %s339
        %v341 = vld [vmem:[%s340] sm:$0x1]
        %342 = vst [vmem:[#allocation2 + $0x6] sm:$0x1] %v341
        %s343 = sadd.s32 %s308, 7
        %s344 = sld [smem:[#allocation5 + %s343]]
        %s345 = scalar_lea.vmem %s296, %s344
        %v346 = vld [vmem:[%s345] sm:$0x1]
        %347 = vst [vmem:[#allocation2 + $0x7] sm:$0x1] %v346
        %s348 = sadd.s32 %s308, 8
        %s349 = sld [smem:[#allocation5 + %s348]]
        %s350 = scalar_lea.vmem %s296, %s349
        %v351 = vld [vmem:[%s350] sm:$0x1]
        %352 = vst [vmem:[#allocation2 + $0x8] sm:$0x1] %v351
        %s353 = sadd.s32 %s308, 9
        %s354 = sld [smem:[#allocation5 + %s353]]
        %s355 = scalar_lea.vmem %s296, %s354
        %v356 = vld [vmem:[%s355] sm:$0x1]
        %357 = vst [vmem:[#allocation2 + $0x9] sm:$0x1] %v356
        %s358 = sadd.s32 %s308, 10
        %s359 = sld [smem:[#allocation5 + %s358]]
        %s360 = scalar_lea.vmem %s296, %s359
        %v361 = vld [vmem:[%s360] sm:$0x1]
        %362 = vst [vmem:[#allocation2 + $0xa] sm:$0x1] %v361
        %s363 = sadd.s32 %s308, 11
        %s364 = sld [smem:[#allocation5 + %s363]]
        %s365 = scalar_lea.vmem %s296, %s364
        %v366 = vld [vmem:[%s365] sm:$0x1]
        %367 = vst [vmem:[#allocation2 + $0xb] sm:$0x1] %v366
        %s368 = sadd.s32 %s308, 12
        %s369 = sld [smem:[#allocation5 + %s368]]
        %s370 = scalar_lea.vmem %s296, %s369
        %v371 = vld [vmem:[%s370] sm:$0x1]
        %372 = vst [vmem:[#allocation2 + $0xc] sm:$0x1] %v371
        %s373 = sadd.s32 %s308, 13
        %s374 = sld [smem:[#allocation5 + %s373]]
        %s375 = scalar_lea.vmem %s296, %s374
        %v376 = vld [vmem:[%s375] sm:$0x1]
        %377 = vst [vmem:[#allocation2 + $0xd] sm:$0x1] %v376
        %s378 = sadd.s32 %s308, 14
        %s379 = sld [smem:[#allocation5 + %s378]]
        %s380 = scalar_lea.vmem %s296, %s379
        %v381 = vld [vmem:[%s380] sm:$0x1]
        %382 = vst [vmem:[#allocation2 + $0xe] sm:$0x1] %v381
        %s383 = sadd.s32 %s308, 15
        %s384 = sld [smem:[#allocation5 + %s383]]
        %s385 = scalar_lea.vmem %s296, %s384
        %v386 = vld [vmem:[%s385] sm:$0x1]
        %387 = vst [vmem:[#allocation2 + $0xf] sm:$0x1] %v386
        %v388 = vld [vmem:[%s247] sm:$0xff]
        %v389 = vld [vmem:[#allocation2] sm:$0xff]
        %vm390 = vcmask 64512
        %v392 = vsel %vm390, %v388, 0
        %394 = vmatprep.subr.mxu0 0.0
        %v395 = vand.u32 %v389, 4294901760
        %396 = vmatpush1.msra.mxu0 %v395
        %397 = vmatprep.subr.mxu0 0.0
        %398 = vmatpush1.msra.mxu0 0.0
        %399 = vmatprep.subr.mxu0 0.0
        %400 = vmatpush1.msra.mxu0 0.0
        %401 = vmatprep.subr.mxu0 0.0
        %402 = vmatpush1.msra.mxu0 0.0
        %403 = vmatprep.subr.mxu0 0.0
        %404 = vmatpush1.msra.mxu0 0.0
        %405 = vmatprep.subr.mxu0 0.0
        %406 = vmatpush1.msra.mxu0 0.0
        %407 = vmatprep.subr.mxu0 0.0
        %408 = vmatpush1.msra.mxu0 0.0
        %409 = vmatprep.subr.mxu0 0.0
        %410 = vmatpush1.msra.mxu0 0.0
        %411 = vmatprep.subr.mxu0 0.0
        %412 = vmatpush1.msra.mxu0 0.0
        %413 = vmatprep.subr.mxu0 0.0
        %414 = vmatpush1.msra.mxu0 0.0
        %415 = vmatprep.subr.mxu0 0.0
        %416 = vmatpush1.msra.mxu0 0.0
        %417 = vmatprep.subr.mxu0 0.0
        %418 = vmatpush1.msra.mxu0 0.0
        %419 = vmatprep.subr.mxu0 0.0
        %420 = vmatpush1.msra.mxu0 0.0
        %421 = vmatprep.subr.mxu0 0.0
        %422 = vmatpush1.msra.mxu0 0.0
        %423 = vmatprep.subr.mxu0 0.0
        %424 = vmatpush1.msra.mxu0 0.0
        %425 = vmatprep.subr.mxu0 0.0
        %426 = vmatpush1.msra.mxu0 0.0
        %427 = vmatprep.subr.mxu0 0.0
        %428 = vmatpush1.msra.mxu0 0.0
        %429 = vmatprep.subr.mxu0 0.0
        %430 = vmatpush1.msra.mxu0 0.0
        %431 = vmatprep.subr.mxu0 0.0
        %432 = vmatpush1.msra.mxu0 0.0
        %433 = vmatprep.subr.mxu0 0.0
        %434 = vmatpush1.msra.mxu0 0.0
        %435 = vmatprep.subr.mxu0 0.0
        %436 = vmatpush1.msra.mxu0 0.0
        %437 = vmatprep.subr.mxu0 0.0
        %438 = vmatpush1.msra.mxu0 0.0
        %439 = vmatprep.subr.mxu0 0.0
        %440 = vmatpush1.msra.mxu0 0.0
        %441 = vmatprep.subr.mxu0 0.0
        %442 = vmatpush1.msra.mxu0 0.0
        %443 = vmatprep.subr.mxu0 0.0
        %444 = vmatpush1.msra.mxu0 0.0
        %445 = vmatprep.subr.mxu0 0.0
        %446 = vmatpush1.msra.mxu0 0.0
        %447 = vmatprep.subr.mxu0 0.0
        %448 = vmatpush1.msra.mxu0 0.0
        %449 = vmatprep.subr.mxu0 0.0
        %450 = vmatpush1.msra.mxu0 0.0
        %451 = vmatprep.subr.mxu0 0.0
        %452 = vmatpush1.msra.mxu0 0.0
        %453 = vmatprep.subr.mxu0 0.0
        %454 = vmatpush1.msra.mxu0 0.0
        %455 = vmatprep.subr.mxu0 0.0
        %456 = vmatpush1.msra.mxu0 0.0
        %457 = vmatprep.subr.mxu0 0.0
        %458 = vmatpush1.msra.mxu0 0.0
        %459 = vmatprep.mubr.f32.mxu0 0.0
        %v460 = vand.u32 %v392, 4294901760
        %v461 = vsub.f32 %v392, %v460
        %v462 = vand.u32 %v461, 4294901760
        %v463 = vsub.f32 %v461, %v462
        %v464 = vand.u32 %v463, 4294901760
        %465 = vmatmul.mubr.f32.gmra.mrb[0].mxu0 %v464
        %v466 = vpop.f32.mrb[0].mxu0
        %v467 = vadd.f32 0.0, %v466
        %v468 = vpop.f32.mrb[0].mxu0
        %469 = vdwg.mxu0
        %470 = vmatprep.subr.mxu0 0.0
        %v471 = vand.u32 %v389, 4294901760
        %v472 = vsub.f32 %v389, %v471
        %v473 = vand.u32 %v472, 4294901760
        %v474 = vsub.f32 %v472, %v473
        %v475 = vand.u32 %v474, 4294901760
        %476 = vmatpush1.msra.mxu0 %v475
        %477 = vmatprep.subr.mxu0 0.0
        %478 = vmatpush1.msra.mxu0 0.0
        %479 = vmatprep.subr.mxu0 0.0
        %480 = vmatpush1.msra.mxu0 0.0
        %481 = vmatprep.subr.mxu0 0.0
        %482 = vmatpush1.msra.mxu0 0.0
        %483 = vmatprep.subr.mxu0 0.0
        %484 = vmatpush1.msra.mxu0 0.0
        %485 = vmatprep.subr.mxu0 0.0
        %486 = vmatpush1.msra.mxu0 0.0
        %487 = vmatprep.subr.mxu0 0.0
        %488 = vmatpush1.msra.mxu0 0.0
        %489 = vmatprep.subr.mxu0 0.0
        %490 = vmatpush1.msra.mxu0 0.0
        %491 = vmatprep.subr.mxu0 0.0
        %492 = vmatpush1.msra.mxu0 0.0
        %493 = vmatprep.subr.mxu0 0.0
        %494 = vmatpush1.msra.mxu0 0.0
        %495 = vmatprep.subr.mxu0 0.0
        %496 = vmatpush1.msra.mxu0 0.0
        %497 = vmatprep.subr.mxu0 0.0
        %498 = vmatpush1.msra.mxu0 0.0
        %499 = vmatprep.subr.mxu0 0.0
        %500 = vmatpush1.msra.mxu0 0.0
        %501 = vmatprep.subr.mxu0 0.0
        %502 = vmatpush1.msra.mxu0 0.0
        %503 = vmatprep.subr.mxu0 0.0
        %504 = vmatpush1.msra.mxu0 0.0
        %505 = vmatprep.subr.mxu0 0.0
        %506 = vmatpush1.msra.mxu0 0.0
        %507 = vmatprep.subr.mxu0 0.0
        %508 = vmatpush1.msra.mxu0 0.0
        %509 = vmatprep.subr.mxu0 0.0
        %510 = vmatpush1.msra.mxu0 0.0
        %511 = vmatprep.subr.mxu0 0.0
        %512 = vmatpush1.msra.mxu0 0.0
        %513 = vmatprep.subr.mxu0 0.0
        %514 = vmatpush1.msra.mxu0 0.0
        %515 = vmatprep.subr.mxu0 0.0
        %516 = vmatpush1.msra.mxu0 0.0
        %517 = vmatprep.subr.mxu0 0.0
        %518 = vmatpush1.msra.mxu0 0.0
        %519 = vmatprep.subr.mxu0 0.0
        %520 = vmatpush1.msra.mxu0 0.0
        %521 = vmatprep.subr.mxu0 0.0
        %522 = vmatpush1.msra.mxu0 0.0
        %523 = vmatprep.subr.mxu0 0.0
        %524 = vmatpush1.msra.mxu0 0.0
        %525 = vmatprep.subr.mxu0 0.0
        %526 = vmatpush1.msra.mxu0 0.0
        %527 = vmatprep.subr.mxu0 0.0
        %528 = vmatpush1.msra.mxu0 0.0
        %529 = vmatprep.subr.mxu0 0.0
        %530 = vmatpush1.msra.mxu0 0.0
        %531 = vmatprep.subr.mxu0 0.0
        %532 = vmatpush1.msra.mxu0 0.0
        %533 = vmatprep.subr.mxu0 0.0
        %534 = vmatpush1.msra.mxu0 0.0
        %535 = vmatprep.subr.mxu0 0.0
        %536 = vmatpush1.msra.mxu0 0.0
        %537 = vmatprep.subr.mxu0 0.0
        %538 = vmatpush1.msra.mxu0 0.0
        %539 = vmatprep.mubr.f32.mxu0 0.0
        %v540 = vand.u32 %v392, 4294901760
        %541 = vmatmul.mubr.f32.gmra.mrb[0].mxu0 %v540
        %v542 = vpop.f32.mrb[0].mxu0
        %v543 = vadd.f32 %v467, %v542
        %v544 = vpop.f32.mrb[0].mxu0
        %545 = vdwg.mxu0
        %546 = vmatprep.subr.mxu0 0.0
        %v547 = vand.u32 %v389, 4294901760
        %v548 = vsub.f32 %v389, %v547
        %549 = vmatpush1.msra.mxu0 %v548
        %550 = vmatprep.subr.mxu0 0.0
        %551 = vmatpush1.msra.mxu0 0.0
        %552 = vmatprep.subr.mxu0 0.0
        %553 = vmatpush1.msra.mxu0 0.0
        %554 = vmatprep.subr.mxu0 0.0
        %555 = vmatpush1.msra.mxu0 0.0
        %556 = vmatprep.subr.mxu0 0.0
        %557 = vmatpush1.msra.mxu0 0.0
        %558 = vmatprep.subr.mxu0 0.0
        %559 = vmatpush1.msra.mxu0 0.0
        %560 = vmatprep.subr.mxu0 0.0
        %561 = vmatpush1.msra.mxu0 0.0
        %562 = vmatprep.subr.mxu0 0.0
        %563 = vmatpush1.msra.mxu0 0.0
        %564 = vmatprep.subr.mxu0 0.0
        %565 = vmatpush1.msra.mxu0 0.0
        %566 = vmatprep.subr.mxu0 0.0
        %567 = vmatpush1.msra.mxu0 0.0
        %568 = vmatprep.subr.mxu0 0.0
        %569 = vmatpush1.msra.mxu0 0.0
        %570 = vmatprep.subr.mxu0 0.0
        %571 = vmatpush1.msra.mxu0 0.0
        %572 = vmatprep.subr.mxu0 0.0
        %573 = vmatpush1.msra.mxu0 0.0
        %574 = vmatprep.subr.mxu0 0.0
        %575 = vmatpush1.msra.mxu0 0.0
        %576 = vmatprep.subr.mxu0 0.0
        %577 = vmatpush1.msra.mxu0 0.0
        %578 = vmatprep.subr.mxu0 0.0
        %579 = vmatpush1.msra.mxu0 0.0
        %580 = vmatprep.subr.mxu0 0.0
        %581 = vmatpush1.msra.mxu0 0.0
        %582 = vmatprep.subr.mxu0 0.0
        %583 = vmatpush1.msra.mxu0 0.0
        %584 = vmatprep.subr.mxu0 0.0
        %585 = vmatpush1.msra.mxu0 0.0
        %586 = vmatprep.subr.mxu0 0.0
        %587 = vmatpush1.msra.mxu0 0.0
        %588 = vmatprep.subr.mxu0 0.0
        %589 = vmatpush1.msra.mxu0 0.0
        %590 = vmatprep.subr.mxu0 0.0
        %591 = vmatpush1.msra.mxu0 0.0
        %592 = vmatprep.subr.mxu0 0.0
        %593 = vmatpush1.msra.mxu0 0.0
        %594 = vmatprep.subr.mxu0 0.0
        %595 = vmatpush1.msra.mxu0 0.0
        %596 = vmatprep.subr.mxu0 0.0
        %597 = vmatpush1.msra.mxu0 0.0
        %598 = vmatprep.subr.mxu0 0.0
        %599 = vmatpush1.msra.mxu0 0.0
        %600 = vmatprep.subr.mxu0 0.0
        %601 = vmatpush1.msra.mxu0 0.0
        %602 = vmatprep.subr.mxu0 0.0
        %603 = vmatpush1.msra.mxu0 0.0
        %604 = vmatprep.subr.mxu0 0.0
        %605 = vmatpush1.msra.mxu0 0.0
        %606 = vmatprep.subr.mxu0 0.0
        %607 = vmatpush1.msra.mxu0 0.0
        %608 = vmatprep.subr.mxu0 0.0
        %609 = vmatpush1.msra.mxu0 0.0
        %610 = vmatprep.subr.mxu0 0.0
        %611 = vmatpush1.msra.mxu0 0.0
        %612 = vmatprep.mubr.f32.mxu0 0.0
        %v613 = vand.u32 %v392, 4294901760
        %v614 = vsub.f32 %v392, %v613
        %615 = vmatmul.mubr.f32.gmra.mrb[0].mxu0 %v614
        %v616 = vpop.f32.mrb[0].mxu0
        %v617 = vadd.f32 %v543, %v616
        %v618 = vpop.f32.mrb[0].mxu0
        %619 = vdwg.mxu0
        %620 = vmatprep.subr.mxu0 0.0
        %v621 = vand.u32 %v389, 4294901760
        %622 = vmatpush1.msra.mxu0 %v621
        %623 = vmatprep.subr.mxu0 0.0
        %624 = vmatpush1.msra.mxu0 0.0
        %625 = vmatprep.subr.mxu0 0.0
        %626 = vmatpush1.msra.mxu0 0.0
        %627 = vmatprep.subr.mxu0 0.0
        %628 = vmatpush1.msra.mxu0 0.0
        %629 = vmatprep.subr.mxu0 0.0
        %630 = vmatpush1.msra.mxu0 0.0
        %631 = vmatprep.subr.mxu0 0.0
        %632 = vmatpush1.msra.mxu0 0.0
        %633 = vmatprep.subr.mxu0 0.0
        %634 = vmatpush1.msra.mxu0 0.0
        %635 = vmatprep.subr.mxu0 0.0
        %636 = vmatpush1.msra.mxu0 0.0
        %637 = vmatprep.subr.mxu0 0.0
        %638 = vmatpush1.msra.mxu0 0.0
        %639 = vmatprep.subr.mxu0 0.0
        %640 = vmatpush1.msra.mxu0 0.0
        %641 = vmatprep.subr.mxu0 0.0
        %642 = vmatpush1.msra.mxu0 0.0
        %643 = vmatprep.subr.mxu0 0.0
        %644 = vmatpush1.msra.mxu0 0.0
        %645 = vmatprep.subr.mxu0 0.0
        %646 = vmatpush1.msra.mxu0 0.0
        %647 = vmatprep.subr.mxu0 0.0
        %648 = vmatpush1.msra.mxu0 0.0
        %649 = vmatprep.subr.mxu0 0.0
        %650 = vmatpush1.msra.mxu0 0.0
        %651 = vmatprep.subr.mxu0 0.0
        %652 = vmatpush1.msra.mxu0 0.0
        %653 = vmatprep.subr.mxu0 0.0
        %654 = vmatpush1.msra.mxu0 0.0
        %655 = vmatprep.subr.mxu0 0.0
        %656 = vmatpush1.msra.mxu0 0.0
        %657 = vmatprep.subr.mxu0 0.0
        %658 = vmatpush1.msra.mxu0 0.0
        %659 = vmatprep.subr.mxu0 0.0
        %660 = vmatpush1.msra.mxu0 0.0
        %661 = vmatprep.subr.mxu0 0.0
        %662 = vmatpush1.msra.mxu0 0.0
        %663 = vmatprep.subr.mxu0 0.0
        %664 = vmatpush1.msra.mxu0 0.0
        %665 = vmatprep.subr.mxu0 0.0
        %666 = vmatpush1.msra.mxu0 0.0
        %667 = vmatprep.subr.mxu0 0.0
        %668 = vmatpush1.msra.mxu0 0.0
        %669 = vmatprep.subr.mxu0 0.0
        %670 = vmatpush1.msra.mxu0 0.0
        %671 = vmatprep.subr.mxu0 0.0
        %672 = vmatpush1.msra.mxu0 0.0
        %673 = vmatprep.subr.mxu0 0.0
        %674 = vmatpush1.msra.mxu0 0.0
        %675 = vmatprep.subr.mxu0 0.0
        %676 = vmatpush1.msra.mxu0 0.0
        %677 = vmatprep.subr.mxu0 0.0
        %678 = vmatpush1.msra.mxu0 0.0
        %679 = vmatprep.subr.mxu0 0.0
        %680 = vmatpush1.msra.mxu0 0.0
        %681 = vmatprep.subr.mxu0 0.0
        %682 = vmatpush1.msra.mxu0 0.0
        %683 = vmatprep.subr.mxu0 0.0
        %684 = vmatpush1.msra.mxu0 0.0
        %685 = vmatprep.mubr.f32.mxu0 0.0
        %v686 = vand.u32 %v392, 4294901760
        %v687 = vsub.f32 %v392, %v686
        %v688 = vand.u32 %v687, 4294901760
        %689 = vmatmul.mubr.f32.gmra.mrb[0].mxu0 %v688
        %v690 = vpop.f32.mrb[0].mxu0
        %v691 = vadd.f32 %v617, %v690
        %v692 = vpop.f32.mrb[0].mxu0
        %693 = vdwg.mxu0
        %694 = vmatprep.subr.mxu0 0.0
        %v695 = vand.u32 %v389, 4294901760
        %v696 = vsub.f32 %v389, %v695
        %v697 = vand.u32 %v696, 4294901760
        %698 = vmatpush1.msra.mxu0 %v697
        %699 = vmatprep.subr.mxu0 0.0
        %700 = vmatpush1.msra.mxu0 0.0
        %701 = vmatprep.subr.mxu0 0.0
        %702 = vmatpush1.msra.mxu0 0.0
        %703 = vmatprep.subr.mxu0 0.0
        %704 = vmatpush1.msra.mxu0 0.0
        %705 = vmatprep.subr.mxu0 0.0
        %706 = vmatpush1.msra.mxu0 0.0
        %707 = vmatprep.subr.mxu0 0.0
        %708 = vmatpush1.msra.mxu0 0.0
        %709 = vmatprep.subr.mxu0 0.0
        %710 = vmatpush1.msra.mxu0 0.0
        %711 = vmatprep.subr.mxu0 0.0
        %712 = vmatpush1.msra.mxu0 0.0
        %713 = vmatprep.subr.mxu0 0.0
        %714 = vmatpush1.msra.mxu0 0.0
        %715 = vmatprep.subr.mxu0 0.0
        %716 = vmatpush1.msra.mxu0 0.0
        %717 = vmatprep.subr.mxu0 0.0
        %718 = vmatpush1.msra.mxu0 0.0
        %719 = vmatprep.subr.mxu0 0.0
        %720 = vmatpush1.msra.mxu0 0.0
        %721 = vmatprep.subr.mxu0 0.0
        %722 = vmatpush1.msra.mxu0 0.0
        %723 = vmatprep.subr.mxu0 0.0
        %724 = vmatpush1.msra.mxu0 0.0
        %725 = vmatprep.subr.mxu0 0.0
        %726 = vmatpush1.msra.mxu0 0.0
        %727 = vmatprep.subr.mxu0 0.0
        %728 = vmatpush1.msra.mxu0 0.0
        %729 = vmatprep.subr.mxu0 0.0
        %730 = vmatpush1.msra.mxu0 0.0
        %731 = vmatprep.subr.mxu0 0.0
        %732 = vmatpush1.msra.mxu0 0.0
        %733 = vmatprep.subr.mxu0 0.0
        %734 = vmatpush1.msra.mxu0 0.0
        %735 = vmatprep.subr.mxu0 0.0
        %736 = vmatpush1.msra.mxu0 0.0
        %737 = vmatprep.subr.mxu0 0.0
        %738 = vmatpush1.msra.mxu0 0.0
        %739 = vmatprep.subr.mxu0 0.0
        %740 = vmatpush1.msra.mxu0 0.0
        %741 = vmatprep.subr.mxu0 0.0
        %742 = vmatpush1.msra.mxu0 0.0
        %743 = vmatprep.subr.mxu0 0.0
        %744 = vmatpush1.msra.mxu0 0.0
        %745 = vmatprep.subr.mxu0 0.0
        %746 = vmatpush1.msra.mxu0 0.0
        %747 = vmatprep.subr.mxu0 0.0
        %748 = vmatpush1.msra.mxu0 0.0
        %749 = vmatprep.subr.mxu0 0.0
        %750 = vmatpush1.msra.mxu0 0.0
        %751 = vmatprep.subr.mxu0 0.0
        %752 = vmatpush1.msra.mxu0 0.0
        %753 = vmatprep.subr.mxu0 0.0
        %754 = vmatpush1.msra.mxu0 0.0
        %755 = vmatprep.subr.mxu0 0.0
        %756 = vmatpush1.msra.mxu0 0.0
        %757 = vmatprep.subr.mxu0 0.0
        %758 = vmatpush1.msra.mxu0 0.0
        %759 = vmatprep.subr.mxu0 0.0
        %760 = vmatpush1.msra.mxu0 0.0
        %761 = vmatprep.mubr.f32.mxu0 0.0
        %v762 = vand.u32 %v392, 4294901760
        %763 = vmatmul.mubr.f32.gmra.mrb[0].mxu0 %v762
        %v764 = vpop.f32.mrb[0].mxu0
        %v765 = vadd.f32 %v691, %v764
        %v766 = vpop.f32.mrb[0].mxu0
        %767 = vdwg.mxu0
        %768 = vmatprep.subr.mxu0 0.0
        %v769 = vand.u32 %v389, 4294901760
        %770 = vmatpush1.msra.mxu0 %v769
        %771 = vmatprep.subr.mxu0 0.0
        %772 = vmatpush1.msra.mxu0 0.0
        %773 = vmatprep.subr.mxu0 0.0
        %774 = vmatpush1.msra.mxu0 0.0
        %775 = vmatprep.subr.mxu0 0.0
        %776 = vmatpush1.msra.mxu0 0.0
        %777 = vmatprep.subr.mxu0 0.0
        %778 = vmatpush1.msra.mxu0 0.0
        %779 = vmatprep.subr.mxu0 0.0
        %780 = vmatpush1.msra.mxu0 0.0
        %781 = vmatprep.subr.mxu0 0.0
        %782 = vmatpush1.msra.mxu0 0.0
        %783 = vmatprep.subr.mxu0 0.0
        %784 = vmatpush1.msra.mxu0 0.0
        %785 = vmatprep.subr.mxu0 0.0
        %786 = vmatpush1.msra.mxu0 0.0
        %787 = vmatprep.subr.mxu0 0.0
        %788 = vmatpush1.msra.mxu0 0.0
        %789 = vmatprep.subr.mxu0 0.0
        %790 = vmatpush1.msra.mxu0 0.0
        %791 = vmatprep.subr.mxu0 0.0
        %792 = vmatpush1.msra.mxu0 0.0
        %793 = vmatprep.subr.mxu0 0.0
        %794 = vmatpush1.msra.mxu0 0.0
        %795 = vmatprep.subr.mxu0 0.0
        %796 = vmatpush1.msra.mxu0 0.0
        %797 = vmatprep.subr.mxu0 0.0
        %798 = vmatpush1.msra.mxu0 0.0
        %799 = vmatprep.subr.mxu0 0.0
        %800 = vmatpush1.msra.mxu0 0.0
        %801 = vmatprep.subr.mxu0 0.0
        %802 = vmatpush1.msra.mxu0 0.0
        %803 = vmatprep.subr.mxu0 0.0
        %804 = vmatpush1.msra.mxu0 0.0
        %805 = vmatprep.subr.mxu0 0.0
        %806 = vmatpush1.msra.mxu0 0.0
        %807 = vmatprep.subr.mxu0 0.0
        %808 = vmatpush1.msra.mxu0 0.0
        %809 = vmatprep.subr.mxu0 0.0
        %810 = vmatpush1.msra.mxu0 0.0
        %811 = vmatprep.subr.mxu0 0.0
        %812 = vmatpush1.msra.mxu0 0.0
        %813 = vmatprep.subr.mxu0 0.0
        %814 = vmatpush1.msra.mxu0 0.0
        %815 = vmatprep.subr.mxu0 0.0
        %816 = vmatpush1.msra.mxu0 0.0
        %817 = vmatprep.subr.mxu0 0.0
        %818 = vmatpush1.msra.mxu0 0.0
        %819 = vmatprep.subr.mxu0 0.0
        %820 = vmatpush1.msra.mxu0 0.0
        %821 = vmatprep.subr.mxu0 0.0
        %822 = vmatpush1.msra.mxu0 0.0
        %823 = vmatprep.subr.mxu0 0.0
        %824 = vmatpush1.msra.mxu0 0.0
        %825 = vmatprep.subr.mxu0 0.0
        %826 = vmatpush1.msra.mxu0 0.0
        %827 = vmatprep.subr.mxu0 0.0
        %828 = vmatpush1.msra.mxu0 0.0
        %829 = vmatprep.subr.mxu0 0.0
        %830 = vmatpush1.msra.mxu0 0.0
        %831 = vmatprep.subr.mxu0 0.0
        %832 = vmatpush1.msra.mxu0 0.0
        %833 = vmatprep.mubr.f32.mxu0 0.0
        %v834 = vand.u32 %v392, 4294901760
        %835 = vmatmul.mubr.f32.gmra.mrb[0].mxu0 %v834
        %v836 = vpop.f32.mrb[0].mxu0
        %v837 = vadd.f32 %v765, %v836
        %v838 = vpop.f32.mrb[0].mxu0
        %839 = vdwg.mxu0
        %840 = vst [vmem:[#allocation3] sm:$0xff] %v837
        %s841 = scalar_lea.vmem %s247, 8 [#allocation6]
        %v842 = vld [vmem:[%s841] sm:$0xff]
        %v843 = vld [vmem:[#allocation2 + $0x8] sm:$0xff]
        %v845 = vsel %vm390, %v842, 0
        %847 = vmatprep.subr.mxu0 0.0
        %v848 = vand.u32 %v843, 4294901760
        %849 = vmatpush1.msra.mxu0 %v848
        %850 = vmatprep.subr.mxu0 0.0
        %851 = vmatpush1.msra.mxu0 0.0
        %852 = vmatprep.subr.mxu0 0.0
        %853 = vmatpush1.msra.mxu0 0.0
        %854 = vmatprep.subr.mxu0 0.0
        %855 = vmatpush1.msra.mxu0 0.0
        %856 = vmatprep.subr.mxu0 0.0
        %857 = vmatpush1.msra.mxu0 0.0
        %858 = vmatprep.subr.mxu0 0.0
        %859 = vmatpush1.msra.mxu0 0.0
        %860 = vmatprep.subr.mxu0 0.0
        %861 = vmatpush1.msra.mxu0 0.0
        %862 = vmatprep.subr.mxu0 0.0
        %863 = vmatpush1.msra.mxu0 0.0
        %864 = vmatprep.subr.mxu0 0.0
        %865 = vmatpush1.msra.mxu0 0.0
        %866 = vmatprep.subr.mxu0 0.0
        %867 = vmatpush1.msra.mxu0 0.0
        %868 = vmatprep.subr.mxu0 0.0
        %869 = vmatpush1.msra.mxu0 0.0
        %870 = vmatprep.subr.mxu0 0.0
        %871 = vmatpush1.msra.mxu0 0.0
        %872 = vmatprep.subr.mxu0 0.0
        %873 = vmatpush1.msra.mxu0 0.0
        %874 = vmatprep.subr.mxu0 0.0
        %875 = vmatpush1.msra.mxu0 0.0
        %876 = vmatprep.subr.mxu0 0.0
        %877 = vmatpush1.msra.mxu0 0.0
        %878 = vmatprep.subr.mxu0 0.0
        %879 = vmatpush1.msra.mxu0 0.0
        %880 = vmatprep.subr.mxu0 0.0
        %881 = vmatpush1.msra.mxu0 0.0
        %882 = vmatprep.subr.mxu0 0.0
        %883 = vmatpush1.msra.mxu0 0.0
        %884 = vmatprep.subr.mxu0 0.0
        %885 = vmatpush1.msra.mxu0 0.0
        %886 = vmatprep.subr.mxu0 0.0
        %887 = vmatpush1.msra.mxu0 0.0
        %888 = vmatprep.subr.mxu0 0.0
        %889 = vmatpush1.msra.mxu0 0.0
        %890 = vmatprep.subr.mxu0 0.0
        %891 = vmatpush1.msra.mxu0 0.0
        %892 = vmatprep.subr.mxu0 0.0
        %893 = vmatpush1.msra.mxu0 0.0
        %894 = vmatprep.subr.mxu0 0.0
        %895 = vmatpush1.msra.mxu0 0.0
        %896 = vmatprep.subr.mxu0 0.0
        %897 = vmatpush1.msra.mxu0 0.0
        %898 = vmatprep.subr.mxu0 0.0
        %899 = vmatpush1.msra.mxu0 0.0
        %900 = vmatprep.subr.mxu0 0.0
        %901 = vmatpush1.msra.mxu0 0.0
        %902 = vmatprep.subr.mxu0 0.0
        %903 = vmatpush1.msra.mxu0 0.0
        %904 = vmatprep.subr.mxu0 0.0
        %905 = vmatpush1.msra.mxu0 0.0
        %906 = vmatprep.subr.mxu0 0.0
        %907 = vmatpush1.msra.mxu0 0.0
        %908 = vmatprep.subr.mxu0 0.0
        %909 = vmatpush1.msra.mxu0 0.0
        %910 = vmatprep.subr.mxu0 0.0
        %911 = vmatpush1.msra.mxu0 0.0
        %912 = vmatprep.mubr.f32.mxu0 0.0
        %v913 = vand.u32 %v845, 4294901760
        %v914 = vsub.f32 %v845, %v913
        %v915 = vand.u32 %v914, 4294901760
        %v916 = vsub.f32 %v914, %v915
        %v917 = vand.u32 %v916, 4294901760
        %918 = vmatmul.mubr.f32.gmra.mrb[0].mxu0 %v917
        %v919 = vpop.f32.mrb[0].mxu0
        %v920 = vadd.f32 0.0, %v919
        %v921 = vpop.f32.mrb[0].mxu0
        %922 = vdwg.mxu0
        %923 = vmatprep.subr.mxu0 0.0
        %v924 = vand.u32 %v843, 4294901760
        %v925 = vsub.f32 %v843, %v924
        %v926 = vand.u32 %v925, 4294901760
        %v927 = vsub.f32 %v925, %v926
        %v928 = vand.u32 %v927, 4294901760
        %929 = vmatpush1.msra.mxu0 %v928
        %930 = vmatprep.subr.mxu0 0.0
        %931 = vmatpush1.msra.mxu0 0.0
        %932 = vmatprep.subr.mxu0 0.0
        %933 = vmatpush1.msra.mxu0 0.0
        %934 = vmatprep.subr.mxu0 0.0
        %935 = vmatpush1.msra.mxu0 0.0
        %936 = vmatprep.subr.mxu0 0.0
        %937 = vmatpush1.msra.mxu0 0.0
        %938 = vmatprep.subr.mxu0 0.0
        %939 = vmatpush1.msra.mxu0 0.0
        %940 = vmatprep.subr.mxu0 0.0
        %941 = vmatpush1.msra.mxu0 0.0
        %942 = vmatprep.subr.mxu0 0.0
        %943 = vmatpush1.msra.mxu0 0.0
        %944 = vmatprep.subr.mxu0 0.0
        %945 = vmatpush1.msra.mxu0 0.0
        %946 = vmatprep.subr.mxu0 0.0
        %947 = vmatpush1.msra.mxu0 0.0
        %948 = vmatprep.subr.mxu0 0.0
        %949 = vmatpush1.msra.mxu0 0.0
        %950 = vmatprep.subr.mxu0 0.0
        %951 = vmatpush1.msra.mxu0 0.0
        %952 = vmatprep.subr.mxu0 0.0
        %953 = vmatpush1.msra.mxu0 0.0
        %954 = vmatprep.subr.mxu0 0.0
        %955 = vmatpush1.msra.mxu0 0.0
        %956 = vmatprep.subr.mxu0 0.0
        %957 = vmatpush1.msra.mxu0 0.0
        %958 = vmatprep.subr.mxu0 0.0
        %959 = vmatpush1.msra.mxu0 0.0
        %960 = vmatprep.subr.mxu0 0.0
        %961 = vmatpush1.msra.mxu0 0.0
        %962 = vmatprep.subr.mxu0 0.0
        %963 = vmatpush1.msra.mxu0 0.0
        %964 = vmatprep.subr.mxu0 0.0
        %965 = vmatpush1.msra.mxu0 0.0
        %966 = vmatprep.subr.mxu0 0.0
        %967 = vmatpush1.msra.mxu0 0.0
        %968 = vmatprep.subr.mxu0 0.0
        %969 = vmatpush1.msra.mxu0 0.0
        %970 = vmatprep.subr.mxu0 0.0
        %971 = vmatpush1.msra.mxu0 0.0
        %972 = vmatprep.subr.mxu0 0.0
        %973 = vmatpush1.msra.mxu0 0.0
        %974 = vmatprep.subr.mxu0 0.0
        %975 = vmatpush1.msra.mxu0 0.0
        %976 = vmatprep.subr.mxu0 0.0
        %977 = vmatpush1.msra.mxu0 0.0
        %978 = vmatprep.subr.mxu0 0.0
        %979 = vmatpush1.msra.mxu0 0.0
        %980 = vmatprep.subr.mxu0 0.0
        %981 = vmatpush1.msra.mxu0 0.0
        %982 = vmatprep.subr.mxu0 0.0
        %983 = vmatpush1.msra.mxu0 0.0
        %984 = vmatprep.subr.mxu0 0.0
        %985 = vmatpush1.msra.mxu0 0.0
        %986 = vmatprep.subr.mxu0 0.0
        %987 = vmatpush1.msra.mxu0 0.0
        %988 = vmatprep.subr.mxu0 0.0
        %989 = vmatpush1.msra.mxu0 0.0
        %990 = vmatprep.subr.mxu0 0.0
        %991 = vmatpush1.msra.mxu0 0.0
        %992 = vmatprep.mubr.f32.mxu0 0.0
        %v993 = vand.u32 %v845, 4294901760
        %994 = vmatmul.mubr.f32.gmra.mrb[0].mxu0 %v993
        %v995 = vpop.f32.mrb[0].mxu0
        %v996 = vadd.f32 %v920, %v995
        %v997 = vpop.f32.mrb[0].mxu0
        %998 = vdwg.mxu0
        %999 = vmatprep.subr.mxu0 0.0
        %v1000 = vand.u32 %v843, 4294901760
        %v1001 = vsub.f32 %v843, %v1000
        %1002 = vmatpush1.msra.mxu0 %v1001
        %1003 = vmatprep.subr.mxu0 0.0
        %1004 = vmatpush1.msra.mxu0 0.0
        %1005 = vmatprep.subr.mxu0 0.0
        %1006 = vmatpush1.msra.mxu0 0.0
        %1007 = vmatprep.subr.mxu0 0.0
        %1008 = vmatpush1.msra.mxu0 0.0
        %1009 = vmatprep.subr.mxu0 0.0
        %1010 = vmatpush1.msra.mxu0 0.0
        %1011 = vmatprep.subr.mxu0 0.0
        %1012 = vmatpush1.msra.mxu0 0.0
        %1013 = vmatprep.subr.mxu0 0.0
        %1014 = vmatpush1.msra.mxu0 0.0
        %1015 = vmatprep.subr.mxu0 0.0
        %1016 = vmatpush1.msra.mxu0 0.0
        %1017 = vmatprep.subr.mxu0 0.0
        %1018 = vmatpush1.msra.mxu0 0.0
        %1019 = vmatprep.subr.mxu0 0.0
        %1020 = vmatpush1.msra.mxu0 0.0
        %1021 = vmatprep.subr.mxu0 0.0
        %1022 = vmatpush1.msra.mxu0 0.0
        %1023 = vmatprep.subr.mxu0 0.0
        %1024 = vmatpush1.msra.mxu0 0.0
        %1025 = vmatprep.subr.mxu0 0.0
        %1026 = vmatpush1.msra.mxu0 0.0
        %1027 = vmatprep.subr.mxu0 0.0
        %1028 = vmatpush1.msra.mxu0 0.0
        %1029 = vmatprep.subr.mxu0 0.0
        %1030 = vmatpush1.msra.mxu0 0.0
        %1031 = vmatprep.subr.mxu0 0.0
        %1032 = vmatpush1.msra.mxu0 0.0
        %1033 = vmatprep.subr.mxu0 0.0
        %1034 = vmatpush1.msra.mxu0 0.0
        %1035 = vmatprep.subr.mxu0 0.0
        %1036 = vmatpush1.msra.mxu0 0.0
        %1037 = vmatprep.subr.mxu0 0.0
        %1038 = vmatpush1.msra.mxu0 0.0
        %1039 = vmatprep.subr.mxu0 0.0
        %1040 = vmatpush1.msra.mxu0 0.0
        %1041 = vmatprep.subr.mxu0 0.0
        %1042 = vmatpush1.msra.mxu0 0.0
        %1043 = vmatprep.subr.mxu0 0.0
        %1044 = vmatpush1.msra.mxu0 0.0
        %1045 = vmatprep.subr.mxu0 0.0
        %1046 = vmatpush1.msra.mxu0 0.0
        %1047 = vmatprep.subr.mxu0 0.0
        %1048 = vmatpush1.msra.mxu0 0.0
        %1049 = vmatprep.subr.mxu0 0.0
        %1050 = vmatpush1.msra.mxu0 0.0
        %1051 = vmatprep.subr.mxu0 0.0
        %1052 = vmatpush1.msra.mxu0 0.0
        %1053 = vmatprep.subr.mxu0 0.0
        %1054 = vmatpush1.msra.mxu0 0.0
        %1055 = vmatprep.subr.mxu0 0.0
        %1056 = vmatpush1.msra.mxu0 0.0
        %1057 = vmatprep.subr.mxu0 0.0
        %1058 = vmatpush1.msra.mxu0 0.0
        %1059 = vmatprep.subr.mxu0 0.0
        %1060 = vmatpush1.msra.mxu0 0.0
        %1061 = vmatprep.subr.mxu0 0.0
        %1062 = vmatpush1.msra.mxu0 0.0
        %1063 = vmatprep.subr.mxu0 0.0
        %1064 = vmatpush1.msra.mxu0 0.0
        %1065 = vmatprep.mubr.f32.mxu0 0.0
        %v1066 = vand.u32 %v845, 4294901760
        %v1067 = vsub.f32 %v845, %v1066
        %1068 = vmatmul.mubr.f32.gmra.mrb[0].mxu0 %v1067
        %v1069 = vpop.f32.mrb[0].mxu0
        %v1070 = vadd.f32 %v996, %v1069
        %v1071 = vpop.f32.mrb[0].mxu0
        %1072 = vdwg.mxu0
        %1073 = vmatprep.subr.mxu0 0.0
        %v1074 = vand.u32 %v843, 4294901760
        %1075 = vmatpush1.msra.mxu0 %v1074
        %1076 = vmatprep.subr.mxu0 0.0
        %1077 = vmatpush1.msra.mxu0 0.0
        %1078 = vmatprep.subr.mxu0 0.0
        %1079 = vmatpush1.msra.mxu0 0.0
        %1080 = vmatprep.subr.mxu0 0.0
        %1081 = vmatpush1.msra.mxu0 0.0
        %1082 = vmatprep.subr.mxu0 0.0
        %1083 = vmatpush1.msra.mxu0 0.0
        %1084 = vmatprep.subr.mxu0 0.0
        %1085 = vmatpush1.msra.mxu0 0.0
        %1086 = vmatprep.subr.mxu0 0.0
        %1087 = vmatpush1.msra.mxu0 0.0
        %1088 = vmatprep.subr.mxu0 0.0
        %1089 = vmatpush1.msra.mxu0 0.0
        %1090 = vmatprep.subr.mxu0 0.0
        %1091 = vmatpush1.msra.mxu0 0.0
        %1092 = vmatprep.subr.mxu0 0.0
        %1093 = vmatpush1.msra.mxu0 0.0
        %1094 = vmatprep.subr.mxu0 0.0
        %1095 = vmatpush1.msra.mxu0 0.0
        %1096 = vmatprep.subr.mxu0 0.0
        %1097 = vmatpush1.msra.mxu0 0.0
        %1098 = vmatprep.subr.mxu0 0.0
        %1099 = vmatpush1.msra.mxu0 0.0
        %1100 = vmatprep.subr.mxu0 0.0
        %1101 = vmatpush1.msra.mxu0 0.0
        %1102 = vmatprep.subr.mxu0 0.0
        %1103 = vmatpush1.msra.mxu0 0.0
        %1104 = vmatprep.subr.mxu0 0.0
        %1105 = vmatpush1.msra.mxu0 0.0
        %1106 = vmatprep.subr.mxu0 0.0
        %1107 = vmatpush1.msra.mxu0 0.0
        %1108 = vmatprep.subr.mxu0 0.0
        %1109 = vmatpush1.msra.mxu0 0.0
        %1110 = vmatprep.subr.mxu0 0.0
        %1111 = vmatpush1.msra.mxu0 0.0
        %1112 = vmatprep.subr.mxu0 0.0
        %1113 = vmatpush1.msra.mxu0 0.0
        %1114 = vmatprep.subr.mxu0 0.0
        %1115 = vmatpush1.msra.mxu0 0.0
        %1116 = vmatprep.subr.mxu0 0.0
        %1117 = vmatpush1.msra.mxu0 0.0
        %1118 = vmatprep.subr.mxu0 0.0
        %1119 = vmatpush1.msra.mxu0 0.0
        %1120 = vmatprep.subr.mxu0 0.0
        %1121 = vmatpush1.msra.mxu0 0.0
        %1122 = vmatprep.subr.mxu0 0.0
        %1123 = vmatpush1.msra.mxu0 0.0
        %1124 = vmatprep.subr.mxu0 0.0
        %1125 = vmatpush1.msra.mxu0 0.0
        %1126 = vmatprep.subr.mxu0 0.0
        %1127 = vmatpush1.msra.mxu0 0.0
        %1128 = vmatprep.subr.mxu0 0.0
        %1129 = vmatpush1.msra.mxu0 0.0
        %1130 = vmatprep.subr.mxu0 0.0
        %1131 = vmatpush1.msra.mxu0 0.0
        %1132 = vmatprep.subr.mxu0 0.0
        %1133 = vmatpush1.msra.mxu0 0.0
        %1134 = vmatprep.subr.mxu0 0.0
        %1135 = vmatpush1.msra.mxu0 0.0
        %1136 = vmatprep.subr.mxu0 0.0
        %1137 = vmatpush1.msra.mxu0 0.0
        %1138 = vmatprep.mubr.f32.mxu0 0.0
        %v1139 = vand.u32 %v845, 4294901760
        %v1140 = vsub.f32 %v845, %v1139
        %v1141 = vand.u32 %v1140, 4294901760
        %1142 = vmatmul.mubr.f32.gmra.mrb[0].mxu0 %v1141
        %v1143 = vpop.f32.mrb[0].mxu0
        %v1144 = vadd.f32 %v1070, %v1143
        %v1145 = vpop.f32.mrb[0].mxu0
        %1146 = vdwg.mxu0
        %1147 = vmatprep.subr.mxu0 0.0
        %v1148 = vand.u32 %v843, 4294901760
        %v1149 = vsub.f32 %v843, %v1148
        %v1150 = vand.u32 %v1149, 4294901760
        %1151 = vmatpush1.msra.mxu0 %v1150
        %1152 = vmatprep.subr.mxu0 0.0
        %1153 = vmatpush1.msra.mxu0 0.0
        %1154 = vmatprep.subr.mxu0 0.0
        %1155 = vmatpush1.msra.mxu0 0.0
        %1156 = vmatprep.subr.mxu0 0.0
        %1157 = vmatpush1.msra.mxu0 0.0
        %1158 = vmatprep.subr.mxu0 0.0
        %1159 = vmatpush1.msra.mxu0 0.0
        %1160 = vmatprep.subr.mxu0 0.0
        %1161 = vmatpush1.msra.mxu0 0.0
        %1162 = vmatprep.subr.mxu0 0.0
        %1163 = vmatpush1.msra.mxu0 0.0
        %1164 = vmatprep.subr.mxu0 0.0
        %1165 = vmatpush1.msra.mxu0 0.0
        %1166 = vmatprep.subr.mxu0 0.0
        %1167 = vmatpush1.msra.mxu0 0.0
        %1168 = vmatprep.subr.mxu0 0.0
        %1169 = vmatpush1.msra.mxu0 0.0
        %1170 = vmatprep.subr.mxu0 0.0
        %1171 = vmatpush1.msra.mxu0 0.0
        %1172 = vmatprep.subr.mxu0 0.0
        %1173 = vmatpush1.msra.mxu0 0.0
        %1174 = vmatprep.subr.mxu0 0.0
        %1175 = vmatpush1.msra.mxu0 0.0
        %1176 = vmatprep.subr.mxu0 0.0
        %1177 = vmatpush1.msra.mxu0 0.0
        %1178 = vmatprep.subr.mxu0 0.0
        %1179 = vmatpush1.msra.mxu0 0.0
        %1180 = vmatprep.subr.mxu0 0.0
        %1181 = vmatpush1.msra.mxu0 0.0
        %1182 = vmatprep.subr.mxu0 0.0
        %1183 = vmatpush1.msra.mxu0 0.0
        %1184 = vmatprep.subr.mxu0 0.0
        %1185 = vmatpush1.msra.mxu0 0.0
        %1186 = vmatprep.subr.mxu0 0.0
        %1187 = vmatpush1.msra.mxu0 0.0
        %1188 = vmatprep.subr.mxu0 0.0
        %1189 = vmatpush1.msra.mxu0 0.0
        %1190 = vmatprep.subr.mxu0 0.0
        %1191 = vmatpush1.msra.mxu0 0.0
        %1192 = vmatprep.subr.mxu0 0.0
        %1193 = vmatpush1.msra.mxu0 0.0
        %1194 = vmatprep.subr.mxu0 0.0
        %1195 = vmatpush1.msra.mxu0 0.0
        %1196 = vmatprep.subr.mxu0 0.0
        %1197 = vmatpush1.msra.mxu0 0.0
        %1198 = vmatprep.subr.mxu0 0.0
        %1199 = vmatpush1.msra.mxu0 0.0
        %1200 = vmatprep.subr.mxu0 0.0
        %1201 = vmatpush1.msra.mxu0 0.0
        %1202 = vmatprep.subr.mxu0 0.0
        %1203 = vmatpush1.msra.mxu0 0.0
        %1204 = vmatprep.subr.mxu0 0.0
        %1205 = vmatpush1.msra.mxu0 0.0
        %1206 = vmatprep.subr.mxu0 0.0
        %1207 = vmatpush1.msra.mxu0 0.0
        %1208 = vmatprep.subr.mxu0 0.0
        %1209 = vmatpush1.msra.mxu0 0.0
        %1210 = vmatprep.subr.mxu0 0.0
        %1211 = vmatpush1.msra.mxu0 0.0
        %1212 = vmatprep.subr.mxu0 0.0
        %1213 = vmatpush1.msra.mxu0 0.0
        %1214 = vmatprep.mubr.f32.mxu0 0.0
        %v1215 = vand.u32 %v845, 4294901760
        %1216 = vmatmul.mubr.f32.gmra.mrb[0].mxu0 %v1215
        %v1217 = vpop.f32.mrb[0].mxu0
        %v1218 = vadd.f32 %v1144, %v1217
        %v1219 = vpop.f32.mrb[0].mxu0
        %1220 = vdwg.mxu0
        %1221 = vmatprep.subr.mxu0 0.0
        %v1222 = vand.u32 %v843, 4294901760
        %1223 = vmatpush1.msra.mxu0 %v1222
        %1224 = vmatprep.subr.mxu0 0.0
        %1225 = vmatpush1.msra.mxu0 0.0
        %1226 = vmatprep.subr.mxu0 0.0
        %1227 = vmatpush1.msra.mxu0 0.0
        %1228 = vmatprep.subr.mxu0 0.0
        %1229 = vmatpush1.msra.mxu0 0.0
        %1230 = vmatprep.subr.mxu0 0.0
        %1231 = vmatpush1.msra.mxu0 0.0
        %1232 = vmatprep.subr.mxu0 0.0
        %1233 = vmatpush1.msra.mxu0 0.0
        %1234 = vmatprep.subr.mxu0 0.0
        %1235 = vmatpush1.msra.mxu0 0.0
        %1236 = vmatprep.subr.mxu0 0.0
        %1237 = vmatpush1.msra.mxu0 0.0
        %1238 = vmatprep.subr.mxu0 0.0
        %1239 = vmatpush1.msra.mxu0 0.0
        %1240 = vmatprep.subr.mxu0 0.0
        %1241 = vmatpush1.msra.mxu0 0.0
        %1242 = vmatprep.subr.mxu0 0.0
        %1243 = vmatpush1.msra.mxu0 0.0
        %1244 = vmatprep.subr.mxu0 0.0
        %1245 = vmatpush1.msra.mxu0 0.0
        %1246 = vmatprep.subr.mxu0 0.0
        %1247 = vmatpush1.msra.mxu0 0.0
        %1248 = vmatprep.subr.mxu0 0.0
        %1249 = vmatpush1.msra.mxu0 0.0
        %1250 = vmatprep.subr.mxu0 0.0
        %1251 = vmatpush1.msra.mxu0 0.0
        %1252 = vmatprep.subr.mxu0 0.0
        %1253 = vmatpush1.msra.mxu0 0.0
        %1254 = vmatprep.subr.mxu0 0.0
        %1255 = vmatpush1.msra.mxu0 0.0
        %1256 = vmatprep.subr.mxu0 0.0
        %1257 = vmatpush1.msra.mxu0 0.0
        %1258 = vmatprep.subr.mxu0 0.0
        %1259 = vmatpush1.msra.mxu0 0.0
        %1260 = vmatprep.subr.mxu0 0.0
        %1261 = vmatpush1.msra.mxu0 0.0
        %1262 = vmatprep.subr.mxu0 0.0
        %1263 = vmatpush1.msra.mxu0 0.0
        %1264 = vmatprep.subr.mxu0 0.0
        %1265 = vmatpush1.msra.mxu0 0.0
        %1266 = vmatprep.subr.mxu0 0.0
        %1267 = vmatpush1.msra.mxu0 0.0
        %1268 = vmatprep.subr.mxu0 0.0
        %1269 = vmatpush1.msra.mxu0 0.0
        %1270 = vmatprep.subr.mxu0 0.0
        %1271 = vmatpush1.msra.mxu0 0.0
        %1272 = vmatprep.subr.mxu0 0.0
        %1273 = vmatpush1.msra.mxu0 0.0
        %1274 = vmatprep.subr.mxu0 0.0
        %1275 = vmatpush1.msra.mxu0 0.0
        %1276 = vmatprep.subr.mxu0 0.0
        %1277 = vmatpush1.msra.mxu0 0.0
        %1278 = vmatprep.subr.mxu0 0.0
        %1279 = vmatpush1.msra.mxu0 0.0
        %1280 = vmatprep.subr.mxu0 0.0
        %1281 = vmatpush1.msra.mxu0 0.0
        %1282 = vmatprep.subr.mxu0 0.0
        %1283 = vmatpush1.msra.mxu0 0.0
        %1284 = vmatprep.subr.mxu0 0.0
        %1285 = vmatpush1.msra.mxu0 0.0
        %1286 = vmatprep.mubr.f32.mxu0 0.0
        %v1287 = vand.u32 %v845, 4294901760
        %1288 = vmatmul.mubr.f32.gmra.mrb[0].mxu0 %v1287
        %v1289 = vpop.f32.mrb[0].mxu0
        %v1290 = vadd.f32 %v1218, %v1289
        %v1291 = vpop.f32.mrb[0].mxu0
        %1292 = vdwg.mxu0
        %1293 = vst [vmem:[#allocation3 + $0x8] sm:$0xff] %v1290
        %s1294 = smul.u32 %s33, 64
        %v1295 = vlaneseq
        %v1296 = vshrl.u32 %v1295, 7
        %v1297 = vadd.s32 %v1296, 8
        %v1298 = vadd.s32 %v1296, 16
        %v1299 = vadd.s32 %v1296, 24
        %v1300 = vadd.s32 %v1296, 32
        %v1301 = vadd.s32 %v1296, 40
        %v1302 = vadd.s32 %v1296, 48
        %v1303 = vadd.s32 %v1296, 56
        %v1304 = vstv %s1294
        %v1305 = vadd.s32 %v1304, %v1296
        %v1306 = vadd.s32 %v1304, %v1297
        %v1307 = vadd.s32 %v1304, %v1298
        %v1308 = vadd.s32 %v1304, %v1299
        %v1309 = vadd.s32 %v1304, %v1300
        %v1310 = vadd.s32 %v1304, %v1301
        %v1311 = vadd.s32 %v1304, %v1302
        %v1312 = vadd.s32 %v1304, %v1303
        %v1313 = vld [vmem:[%s291] sm:$0x1]
        %v1314 = vlaneseq
        %v1315 = vshrl.u32 %v1314, 7
        %v1316 = vsub.s32 0, %v1315
        %v1317 = vrot.slane %v1313, %v1316
        %vm1318 = vcmp.eq.s32.totalorder %v1305, %v1317
        %vm1319 = vcmp.eq.s32.totalorder %v1306, %v1317
        %vm1320 = vcmp.eq.s32.totalorder %v1307, %v1317
        %vm1321 = vcmp.eq.s32.totalorder %v1308, %v1317
        %vm1322 = vcmp.eq.s32.totalorder %v1309, %v1317
        %vm1323 = vcmp.eq.s32.totalorder %v1310, %v1317
        %vm1324 = vcmp.eq.s32.totalorder %v1311, %v1317
        %vm1325 = vcmp.eq.s32.totalorder %v1312, %v1317
        %v1326 = vsel %vm1318, 1, 0
        %v1327 = vsel %vm1319, 1, 0
        %v1328 = vsel %vm1320, 1, 0
        %v1329 = vsel %vm1321, 1, 0
        %v1330 = vsel %vm1322, 1, 0
        %v1331 = vsel %vm1323, 1, 0
        %v1332 = vsel %vm1324, 1, 0
        %v1333 = vsel %vm1325, 1, 0
        %v1334 = vcvt.s32.f32 %v1326
        %v1335 = vcvt.s32.f32 %v1327
        %v1336 = vcvt.s32.f32 %v1328
        %v1337 = vcvt.s32.f32 %v1329
        %v1338 = vcvt.s32.f32 %v1330
        %v1339 = vcvt.s32.f32 %v1331
        %v1340 = vcvt.s32.f32 %v1332
        %v1341 = vcvt.s32.f32 %v1333
        %v1342 = vld [vmem:[#allocation3] sm:$0xff]
        %v1343 = vld [vmem:[#allocation3 + $0x8] sm:$0xff]
        %vm1344 = vcmask 130048
        %v1346 = vsel %vm1344, %v1334, 0
        %v1349 = vsel %vm1344, %v1335, 0
        %v1352 = vsel %vm1344, %v1336, 0
        %v1355 = vsel %vm1344, %v1337, 0
        %v1358 = vsel %vm1344, %v1338, 0
        %v1361 = vsel %vm1344, %v1339, 0
        %v1364 = vsel %vm1344, %v1340, 0
        %v1367 = vsel %vm1344, %v1341, 0
        %1369 = vmatprep.subr.mxu0 0.0
        %v1370 = vand.u32 %v1342, 4294901760
        %1371 = vmatpush1.msra.mxu0 %v1370
        %1372 = vmatprep.subr.mxu0 0.0
        %v1373 = vand.u32 %v1343, 4294901760
        %1374 = vmatpush1.msra.mxu0 %v1373
        %1375 = vmatprep.subr.mxu0 0.0
        %1376 = vmatpush1.msra.mxu0 0.0
        %1377 = vmatprep.subr.mxu0 0.0
        %1378 = vmatpush1.msra.mxu0 0.0
        %1379 = vmatprep.subr.mxu0 0.0
        %1380 = vmatpush1.msra.mxu0 0.0
        %1381 = vmatprep.subr.mxu0 0.0
        %1382 = vmatpush1.msra.mxu0 0.0
        %1383 = vmatprep.subr.mxu0 0.0
        %1384 = vmatpush1.msra.mxu0 0.0
        %1385 = vmatprep.subr.mxu0 0.0
        %1386 = vmatpush1.msra.mxu0 0.0
        %1387 = vmatprep.subr.mxu0 0.0
        %1388 = vmatpush1.msra.mxu0 0.0
        %1389 = vmatprep.subr.mxu0 0.0
        %1390 = vmatpush1.msra.mxu0 0.0
        %1391 = vmatprep.subr.mxu0 0.0
        %1392 = vmatpush1.msra.mxu0 0.0
        %1393 = vmatprep.subr.mxu0 0.0
        %1394 = vmatpush1.msra.mxu0 0.0
        %1395 = vmatprep.subr.mxu0 0.0
        %1396 = vmatpush1.msra.mxu0 0.0
        %1397 = vmatprep.subr.mxu0 0.0
        %1398 = vmatpush1.msra.mxu0 0.0
        %1399 = vmatprep.subr.mxu0 0.0
        %1400 = vmatpush1.msra.mxu0 0.0
        %1401 = vmatprep.subr.mxu0 0.0
        %1402 = vmatpush1.msra.mxu0 0.0
        %1403 = vmatprep.subr.mxu0 0.0
        %1404 = vmatpush1.msra.mxu0 0.0
        %1405 = vmatprep.subr.mxu0 0.0
        %1406 = vmatpush1.msra.mxu0 0.0
        %1407 = vmatprep.subr.mxu0 0.0
        %1408 = vmatpush1.msra.mxu0 0.0
        %1409 = vmatprep.subr.mxu0 0.0
        %1410 = vmatpush1.msra.mxu0 0.0
        %1411 = vmatprep.subr.mxu0 0.0
        %1412 = vmatpush1.msra.mxu0 0.0
        %1413 = vmatprep.subr.mxu0 0.0
        %1414 = vmatpush1.msra.mxu0 0.0
        %1415 = vmatprep.subr.mxu0 0.0
        %1416 = vmatpush1.msra.mxu0 0.0
        %1417 = vmatprep.subr.mxu0 0.0
        %1418 = vmatpush1.msra.mxu0 0.0
        %1419 = vmatprep.subr.mxu0 0.0
        %1420 = vmatpush1.msra.mxu0 0.0
        %1421 = vmatprep.subr.mxu0 0.0
        %1422 = vmatpush1.msra.mxu0 0.0
        %1423 = vmatprep.subr.mxu0 0.0
        %1424 = vmatpush1.msra.mxu0 0.0
        %1425 = vmatprep.subr.mxu0 0.0
        %1426 = vmatpush1.msra.mxu0 0.0
        %1427 = vmatprep.subr.mxu0 0.0
        %1428 = vmatpush1.msra.mxu0 0.0
        %1429 = vmatprep.subr.mxu0 0.0
        %1430 = vmatpush1.msra.mxu0 0.0
        %1431 = vmatprep.subr.mxu0 0.0
        %1432 = vmatpush1.msra.mxu0 0.0
        %1433 = vmatprep.subr.mxu0 0.0
        %1434 = vmatpush1.msra.mxu0 0.0
        %1435 = vmatprep.mubr.f32.mxu0 0.0
        %v1436 = vand.u32 %v1346, 4294901760
        %v1437 = vsub.f32 %v1346, %v1436
        %v1438 = vand.u32 %v1437, 4294901760
        %v1439 = vsub.f32 %v1437, %v1438
        %v1440 = vand.u32 %v1439, 4294901760
        %1441 = vmatmul.mubr.f32.gmra.mrb[0].mxu0 %v1440
        %v1442 = vpop.f32.mrb[0].mxu0
        %v1443 = vadd.f32 0.0, %v1442
        %v1444 = vpop.f32.mrb[0].mxu0
        %1445 = vmatprep.mubr.f32.mxu0 0.0
        %v1446 = vand.u32 %v1349, 4294901760
        %v1447 = vsub.f32 %v1349, %v1446
        %v1448 = vand.u32 %v1447, 4294901760
        %v1449 = vsub.f32 %v1447, %v1448
        %v1450 = vand.u32 %v1449, 4294901760
        %1451 = vmatmul.mubr.f32.gmra.mrb[0].mxu0 %v1450
        %v1452 = vpop.f32.mrb[0].mxu0
        %v1453 = vadd.f32 0.0, %v1452
        %v1454 = vpop.f32.mrb[0].mxu0
        %1455 = vmatprep.mubr.f32.mxu0 0.0
        %v1456 = vand.u32 %v1352, 4294901760
        %v1457 = vsub.f32 %v1352, %v1456
        %v1458 = vand.u32 %v1457, 4294901760
        %v1459 = vsub.f32 %v1457, %v1458
        %v1460 = vand.u32 %v1459, 4294901760
        %1461 = vmatmul.mubr.f32.gmra.mrb[0].mxu0 %v1460
        %v1462 = vpop.f32.mrb[0].mxu0
        %v1463 = vadd.f32 0.0, %v1462
        %v1464 = vpop.f32.mrb[0].mxu0
        %1465 = vmatprep.mubr.f32.mxu0 0.0
        %v1466 = vand.u32 %v1355, 4294901760
        %v1467 = vsub.f32 %v1355, %v1466
        %v1468 = vand.u32 %v1467, 4294901760
        %v1469 = vsub.f32 %v1467, %v1468
        %v1470 = vand.u32 %v1469, 4294901760
        %1471 = vmatmul.mubr.f32.gmra.mrb[0].mxu0 %v1470
        %v1472 = vpop.f32.mrb[0].mxu0
        %v1473 = vadd.f32 0.0, %v1472
        %v1474 = vpop.f32.mrb[0].mxu0
        %1475 = vmatprep.mubr.f32.mxu0 0.0
        %v1476 = vand.u32 %v1358, 4294901760
        %v1477 = vsub.f32 %v1358, %v1476
        %v1478 = vand.u32 %v1477, 4294901760
        %v1479 = vsub.f32 %v1477, %v1478
        %v1480 = vand.u32 %v1479, 4294901760
        %1481 = vmatmul.mubr.f32.gmra.mrb[0].mxu0 %v1480
        %v1482 = vpop.f32.mrb[0].mxu0
        %v1483 = vadd.f32 0.0, %v1482
        %v1484 = vpop.f32.mrb[0].mxu0
        %1485 = vmatprep.mubr.f32.mxu0 0.0
        %v1486 = vand.u32 %v1361, 4294901760
        %v1487 = vsub.f32 %v1361, %v1486
        %v1488 = vand.u32 %v1487, 4294901760
        %v1489 = vsub.f32 %v1487, %v1488
        %v1490 = vand.u32 %v1489, 4294901760
        %1491 = vmatmul.mubr.f32.gmra.mrb[0].mxu0 %v1490
        %v1492 = vpop.f32.mrb[0].mxu0
        %v1493 = vadd.f32 0.0, %v1492
        %v1494 = vpop.f32.mrb[0].mxu0
        %1495 = vmatprep.mubr.f32.mxu0 0.0
        %v1496 = vand.u32 %v1364, 4294901760
        %v1497 = vsub.f32 %v1364, %v1496
        %v1498 = vand.u32 %v1497, 4294901760
        %v1499 = vsub.f32 %v1497, %v1498
        %v1500 = vand.u32 %v1499, 4294901760
        %1501 = vmatmul.mubr.f32.gmra.mrb[0].mxu0 %v1500
        %v1502 = vpop.f32.mrb[0].mxu0
        %v1503 = vadd.f32 0.0, %v1502
        %v1504 = vpop.f32.mrb[0].mxu0
        %1505 = vmatprep.mubr.f32.mxu0 0.0
        %v1506 = vand.u32 %v1367, 4294901760
        %v1507 = vsub.f32 %v1367, %v1506
        %v1508 = vand.u32 %v1507, 4294901760
        %v1509 = vsub.f32 %v1507, %v1508
        %v1510 = vand.u32 %v1509, 4294901760
        %1511 = vmatmul.mubr.f32.gmra.mrb[0].mxu0 %v1510
        %v1512 = vpop.f32.mrb[0].mxu0
        %v1513 = vadd.f32 0.0, %v1512
        %v1514 = vpop.f32.mrb[0].mxu0
        %1515 = vdwg.mxu0
        %1516 = vmatprep.subr.mxu0 0.0
        %v1517 = vand.u32 %v1342, 4294901760
        %v1518 = vsub.f32 %v1342, %v1517
        %v1519 = vand.u32 %v1518, 4294901760
        %v1520 = vsub.f32 %v1518, %v1519
        %v1521 = vand.u32 %v1520, 4294901760
        %1522 = vmatpush1.msra.mxu0 %v1521
        %1523 = vmatprep.subr.mxu0 0.0
        %v1524 = vand.u32 %v1343, 4294901760
        %v1525 = vsub.f32 %v1343, %v1524
        %v1526 = vand.u32 %v1525, 4294901760
        %v1527 = vsub.f32 %v1525, %v1526
        %v1528 = vand.u32 %v1527, 4294901760
        %1529 = vmatpush1.msra.mxu0 %v1528
        %1530 = vmatprep.subr.mxu0 0.0
        %1531 = vmatpush1.msra.mxu0 0.0
        %1532 = vmatprep.subr.mxu0 0.0
        %1533 = vmatpush1.msra.mxu0 0.0
        %1534 = vmatprep.subr.mxu0 0.0
        %1535 = vmatpush1.msra.mxu0 0.0
        %1536 = vmatprep.subr.mxu0 0.0
        %1537 = vmatpush1.msra.mxu0 0.0
        %1538 = vmatprep.subr.mxu0 0.0
        %1539 = vmatpush1.msra.mxu0 0.0
        %1540 = vmatprep.subr.mxu0 0.0
        %1541 = vmatpush1.msra.mxu0 0.0
        %1542 = vmatprep.subr.mxu0 0.0
        %1543 = vmatpush1.msra.mxu0 0.0
        %1544 = vmatprep.subr.mxu0 0.0
        %1545 = vmatpush1.msra.mxu0 0.0
        %1546 = vmatprep.subr.mxu0 0.0
        %1547 = vmatpush1.msra.mxu0 0.0
        %1548 = vmatprep.subr.mxu0 0.0
        %1549 = vmatpush1.msra.mxu0 0.0
        %1550 = vmatprep.subr.mxu0 0.0
        %1551 = vmatpush1.msra.mxu0 0.0
        %1552 = vmatprep.subr.mxu0 0.0
        %1553 = vmatpush1.msra.mxu0 0.0
        %1554 = vmatprep.subr.mxu0 0.0
        %1555 = vmatpush1.msra.mxu0 0.0
        %1556 = vmatprep.subr.mxu0 0.0
        %1557 = vmatpush1.msra.mxu0 0.0
        %1558 = vmatprep.subr.mxu0 0.0
        %1559 = vmatpush1.msra.mxu0 0.0
        %1560 = vmatprep.subr.mxu0 0.0
        %1561 = vmatpush1.msra.mxu0 0.0
        %1562 = vmatprep.subr.mxu0 0.0
        %1563 = vmatpush1.msra.mxu0 0.0
        %1564 = vmatprep.subr.mxu0 0.0
        %1565 = vmatpush1.msra.mxu0 0.0
        %1566 = vmatprep.subr.mxu0 0.0
        %1567 = vmatpush1.msra.mxu0 0.0
        %1568 = vmatprep.subr.mxu0 0.0
        %1569 = vmatpush1.msra.mxu0 0.0
        %1570 = vmatprep.subr.mxu0 0.0
        %1571 = vmatpush1.msra.mxu0 0.0
        %1572 = vmatprep.subr.mxu0 0.0
        %1573 = vmatpush1.msra.mxu0 0.0
        %1574 = vmatprep.subr.mxu0 0.0
        %1575 = vmatpush1.msra.mxu0 0.0
        %1576 = vmatprep.subr.mxu0 0.0
        %1577 = vmatpush1.msra.mxu0 0.0
        %1578 = vmatprep.subr.mxu0 0.0
        %1579 = vmatpush1.msra.mxu0 0.0
        %1580 = vmatprep.subr.mxu0 0.0
        %1581 = vmatpush1.msra.mxu0 0.0
        %1582 = vmatprep.subr.mxu0 0.0
        %1583 = vmatpush1.msra.mxu0 0.0
        %1584 = vmatprep.subr.mxu0 0.0
        %1585 = vmatpush1.msra.mxu0 0.0
        %1586 = vmatprep.subr.mxu0 0.0
        %1587 = vmatpush1.msra.mxu0 0.0
        %1588 = vmatprep.subr.mxu0 0.0
        %1589 = vmatpush1.msra.mxu0 0.0
        %1590 = vmatprep.mubr.f32.mxu0 0.0
        %v1591 = vand.u32 %v1346, 4294901760
        %1592 = vmatmul.mubr.f32.gmra.mrb[0].mxu0 %v1591
        %v1593 = vpop.f32.mrb[0].mxu0
        %v1594 = vadd.f32 %v1443, %v1593
        %v1595 = vpop.f32.mrb[0].mxu0
        %1596 = vmatprep.mubr.f32.mxu0 0.0
        %v1597 = vand.u32 %v1349, 4294901760
        %1598 = vmatmul.mubr.f32.gmra.mrb[0].mxu0 %v1597
        %v1599 = vpop.f32.mrb[0].mxu0
        %v1600 = vadd.f32 %v1453, %v1599
        %v1601 = vpop.f32.mrb[0].mxu0
        %1602 = vmatprep.mubr.f32.mxu0 0.0
        %v1603 = vand.u32 %v1352, 4294901760
        %1604 = vmatmul.mubr.f32.gmra.mrb[0].mxu0 %v1603
        %v1605 = vpop.f32.mrb[0].mxu0
        %v1606 = vadd.f32 %v1463, %v1605
        %v1607 = vpop.f32.mrb[0].mxu0
        %1608 = vmatprep.mubr.f32.mxu0 0.0
        %v1609 = vand.u32 %v1355, 4294901760
        %1610 = vmatmul.mubr.f32.gmra.mrb[0].mxu0 %v1609
        %v1611 = vpop.f32.mrb[0].mxu0
        %v1612 = vadd.f32 %v1473, %v1611
        %v1613 = vpop.f32.mrb[0].mxu0
        %1614 = vmatprep.mubr.f32.mxu0 0.0
        %v1615 = vand.u32 %v1358, 4294901760
        %1616 = vmatmul.mubr.f32.gmra.mrb[0].mxu0 %v1615
        %v1617 = vpop.f32.mrb[0].mxu0
        %v1618 = vadd.f32 %v1483, %v1617
        %v1619 = vpop.f32.mrb[0].mxu0
        %1620 = vmatprep.mubr.f32.mxu0 0.0
        %v1621 = vand.u32 %v1361, 4294901760
        %1622 = vmatmul.mubr.f32.gmra.mrb[0].mxu0 %v1621
        %v1623 = vpop.f32.mrb[0].mxu0
        %v1624 = vadd.f32 %v1493, %v1623
        %v1625 = vpop.f32.mrb[0].mxu0
        %1626 = vmatprep.mubr.f32.mxu0 0.0
        %v1627 = vand.u32 %v1364, 4294901760
        %1628 = vmatmul.mubr.f32.gmra.mrb[0].mxu0 %v1627
        %v1629 = vpop.f32.mrb[0].mxu0
        %v1630 = vadd.f32 %v1503, %v1629
        %v1631 = vpop.f32.mrb[0].mxu0
        %1632 = vmatprep.mubr.f32.mxu0 0.0
        %v1633 = vand.u32 %v1367, 4294901760
        %1634 = vmatmul.mubr.f32.gmra.mrb[0].mxu0 %v1633
        %v1635 = vpop.f32.mrb[0].mxu0
        %v1636 = vadd.f32 %v1513, %v1635
        %v1637 = vpop.f32.mrb[0].mxu0
        %1638 = vdwg.mxu0
        %1639 = vmatprep.subr.mxu0 0.0
        %v1640 = vand.u32 %v1342, 4294901760
        %v1641 = vsub.f32 %v1342, %v1640
        %1642 = vmatpush1.msra.mxu0 %v1641
        %1643 = vmatprep.subr.mxu0 0.0
        %v1644 = vand.u32 %v1343, 4294901760
        %v1645 = vsub.f32 %v1343, %v1644
        %1646 = vmatpush1.msra.mxu0 %v1645
        %1647 = vmatprep.subr.mxu0 0.0
        %1648 = vmatpush1.msra.mxu0 0.0
        %1649 = vmatprep.subr.mxu0 0.0
        %1650 = vmatpush1.msra.mxu0 0.0
        %1651 = vmatprep.subr.mxu0 0.0
        %1652 = vmatpush1.msra.mxu0 0.0
        %1653 = vmatprep.subr.mxu0 0.0
        %1654 = vmatpush1.msra.mxu0 0.0
        %1655 = vmatprep.subr.mxu0 0.0
        %1656 = vmatpush1.msra.mxu0 0.0
        %1657 = vmatprep.subr.mxu0 0.0
        %1658 = vmatpush1.msra.mxu0 0.0
        %1659 = vmatprep.subr.mxu0 0.0
        %1660 = vmatpush1.msra.mxu0 0.0
        %1661 = vmatprep.subr.mxu0 0.0
        %1662 = vmatpush1.msra.mxu0 0.0
        %1663 = vmatprep.subr.mxu0 0.0
        %1664 = vmatpush1.msra.mxu0 0.0
        %1665 = vmatprep.subr.mxu0 0.0
        %1666 = vmatpush1.msra.mxu0 0.0
        %1667 = vmatprep.subr.mxu0 0.0
        %1668 = vmatpush1.msra.mxu0 0.0
        %1669 = vmatprep.subr.mxu0 0.0
        %1670 = vmatpush1.msra.mxu0 0.0
        %1671 = vmatprep.subr.mxu0 0.0
        %1672 = vmatpush1.msra.mxu0 0.0
        %1673 = vmatprep.subr.mxu0 0.0
        %1674 = vmatpush1.msra.mxu0 0.0
        %1675 = vmatprep.subr.mxu0 0.0
        %1676 = vmatpush1.msra.mxu0 0.0
        %1677 = vmatprep.subr.mxu0 0.0
        %1678 = vmatpush1.msra.mxu0 0.0
        %1679 = vmatprep.subr.mxu0 0.0
        %1680 = vmatpush1.msra.mxu0 0.0
        %1681 = vmatprep.subr.mxu0 0.0
        %1682 = vmatpush1.msra.mxu0 0.0
        %1683 = vmatprep.subr.mxu0 0.0
        %1684 = vmatpush1.msra.mxu0 0.0
        %1685 = vmatprep.subr.mxu0 0.0
        %1686 = vmatpush1.msra.mxu0 0.0
        %1687 = vmatprep.subr.mxu0 0.0
        %1688 = vmatpush1.msra.mxu0 0.0
        %1689 = vmatprep.subr.mxu0 0.0
        %1690 = vmatpush1.msra.mxu0 0.0
        %1691 = vmatprep.subr.mxu0 0.0
        %1692 = vmatpush1.msra.mxu0 0.0
        %1693 = vmatprep.subr.mxu0 0.0
        %1694 = vmatpush1.msra.mxu0 0.0
        %1695 = vmatprep.subr.mxu0 0.0
        %1696 = vmatpush1.msra.mxu0 0.0
        %1697 = vmatprep.subr.mxu0 0.0
        %1698 = vmatpush1.msra.mxu0 0.0
        %1699 = vmatprep.subr.mxu0 0.0
        %1700 = vmatpush1.msra.mxu0 0.0
        %1701 = vmatprep.subr.mxu0 0.0
        %1702 = vmatpush1.msra.mxu0 0.0
        %1703 = vmatprep.subr.mxu0 0.0
        %1704 = vmatpush1.msra.mxu0 0.0
        %1705 = vmatprep.subr.mxu0 0.0
        %1706 = vmatpush1.msra.mxu0 0.0
        %1707 = vmatprep.mubr.f32.mxu0 0.0
        %v1708 = vand.u32 %v1346, 4294901760
        %v1709 = vsub.f32 %v1346, %v1708
        %1710 = vmatmul.mubr.f32.gmra.mrb[0].mxu0 %v1709
        %v1711 = vpop.f32.mrb[0].mxu0
        %v1712 = vadd.f32 %v1594, %v1711
        %v1713 = vpop.f32.mrb[0].mxu0
        %1714 = vmatprep.mubr.f32.mxu0 0.0
        %v1715 = vand.u32 %v1349, 4294901760
        %v1716 = vsub.f32 %v1349, %v1715
        %1717 = vmatmul.mubr.f32.gmra.mrb[0].mxu0 %v1716
        %v1718 = vpop.f32.mrb[0].mxu0
        %v1719 = vadd.f32 %v1600, %v1718
        %v1720 = vpop.f32.mrb[0].mxu0
        %1721 = vmatprep.mubr.f32.mxu0 0.0
        %v1722 = vand.u32 %v1352, 4294901760
        %v1723 = vsub.f32 %v1352, %v1722
        %1724 = vmatmul.mubr.f32.gmra.mrb[0].mxu0 %v1723
        %v1725 = vpop.f32.mrb[0].mxu0
        %v1726 = vadd.f32 %v1606, %v1725
        %v1727 = vpop.f32.mrb[0].mxu0
        %1728 = vmatprep.mubr.f32.mxu0 0.0
        %v1729 = vand.u32 %v1355, 4294901760
        %v1730 = vsub.f32 %v1355, %v1729
        %1731 = vmatmul.mubr.f32.gmra.mrb[0].mxu0 %v1730
        %v1732 = vpop.f32.mrb[0].mxu0
        %v1733 = vadd.f32 %v1612, %v1732
        %v1734 = vpop.f32.mrb[0].mxu0
        %1735 = vmatprep.mubr.f32.mxu0 0.0
        %v1736 = vand.u32 %v1358, 4294901760
        %v1737 = vsub.f32 %v1358, %v1736
        %1738 = vmatmul.mubr.f32.gmra.mrb[0].mxu0 %v1737
        %v1739 = vpop.f32.mrb[0].mxu0
        %v1740 = vadd.f32 %v1618, %v1739
        %v1741 = vpop.f32.mrb[0].mxu0
        %1742 = vmatprep.mubr.f32.mxu0 0.0
        %v1743 = vand.u32 %v1361, 4294901760
        %v1744 = vsub.f32 %v1361, %v1743
        %1745 = vmatmul.mubr.f32.gmra.mrb[0].mxu0 %v1744
        %v1746 = vpop.f32.mrb[0].mxu0
        %v1747 = vadd.f32 %v1624, %v1746
        %v1748 = vpop.f32.mrb[0].mxu0
        %1749 = vmatprep.mubr.f32.mxu0 0.0
        %v1750 = vand.u32 %v1364, 4294901760
        %v1751 = vsub.f32 %v1364, %v1750
        %1752 = vmatmul.mubr.f32.gmra.mrb[0].mxu0 %v1751
        %v1753 = vpop.f32.mrb[0].mxu0
        %v1754 = vadd.f32 %v1630, %v1753
        %v1755 = vpop.f32.mrb[0].mxu0
        %1756 = vmatprep.mubr.f32.mxu0 0.0
        %v1757 = vand.u32 %v1367, 4294901760
        %v1758 = vsub.f32 %v1367, %v1757
        %1759 = vmatmul.mubr.f32.gmra.mrb[0].mxu0 %v1758
        %v1760 = vpop.f32.mrb[0].mxu0
        %v1761 = vadd.f32 %v1636, %v1760
        %v1762 = vpop.f32.mrb[0].mxu0
        %1763 = vdwg.mxu0
        %1764 = vmatprep.subr.mxu0 0.0
        %v1765 = vand.u32 %v1342, 4294901760
        %1766 = vmatpush1.msra.mxu0 %v1765
        %1767 = vmatprep.subr.mxu0 0.0
        %v1768 = vand.u32 %v1343, 4294901760
        %1769 = vmatpush1.msra.mxu0 %v1768
        %1770 = vmatprep.subr.mxu0 0.0
        %1771 = vmatpush1.msra.mxu0 0.0
        %1772 = vmatprep.subr.mxu0 0.0
        %1773 = vmatpush1.msra.mxu0 0.0
        %1774 = vmatprep.subr.mxu0 0.0
        %1775 = vmatpush1.msra.mxu0 0.0
        %1776 = vmatprep.subr.mxu0 0.0
        %1777 = vmatpush1.msra.mxu0 0.0
        %1778 = vmatprep.subr.mxu0 0.0
        %1779 = vmatpush1.msra.mxu0 0.0
        %1780 = vmatprep.subr.mxu0 0.0
        %1781 = vmatpush1.msra.mxu0 0.0
        %1782 = vmatprep.subr.mxu0 0.0
        %1783 = vmatpush1.msra.mxu0 0.0
        %1784 = vmatprep.subr.mxu0 0.0
        %1785 = vmatpush1.msra.mxu0 0.0
        %1786 = vmatprep.subr.mxu0 0.0
        %1787 = vmatpush1.msra.mxu0 0.0
        %1788 = vmatprep.subr.mxu0 0.0
        %1789 = vmatpush1.msra.mxu0 0.0
        %1790 = vmatprep.subr.mxu0 0.0
        %1791 = vmatpush1.msra.mxu0 0.0
        %1792 = vmatprep.subr.mxu0 0.0
        %1793 = vmatpush1.msra.mxu0 0.0
        %1794 = vmatprep.subr.mxu0 0.0
        %1795 = vmatpush1.msra.mxu0 0.0
        %1796 = vmatprep.subr.mxu0 0.0
        %1797 = vmatpush1.msra.mxu0 0.0
        %1798 = vmatprep.subr.mxu0 0.0
        %1799 = vmatpush1.msra.mxu0 0.0
        %1800 = vmatprep.subr.mxu0 0.0
        %1801 = vmatpush1.msra.mxu0 0.0
        %1802 = vmatprep.subr.mxu0 0.0
        %1803 = vmatpush1.msra.mxu0 0.0
        %1804 = vmatprep.subr.mxu0 0.0
        %1805 = vmatpush1.msra.mxu0 0.0
        %1806 = vmatprep.subr.mxu0 0.0
        %1807 = vmatpush1.msra.mxu0 0.0
        %1808 = vmatprep.subr.mxu0 0.0
        %1809 = vmatpush1.msra.mxu0 0.0
        %1810 = vmatprep.subr.mxu0 0.0
        %1811 = vmatpush1.msra.mxu0 0.0
        %1812 = vmatprep.subr.mxu0 0.0
        %1813 = vmatpush1.msra.mxu0 0.0
        %1814 = vmatprep.subr.mxu0 0.0
        %1815 = vmatpush1.msra.mxu0 0.0
        %1816 = vmatprep.subr.mxu0 0.0
        %1817 = vmatpush1.msra.mxu0 0.0
        %1818 = vmatprep.subr.mxu0 0.0
        %1819 = vmatpush1.msra.mxu0 0.0
        %1820 = vmatprep.subr.mxu0 0.0
        %1821 = vmatpush1.msra.mxu0 0.0
        %1822 = vmatprep.subr.mxu0 0.0
        %1823 = vmatpush1.msra.mxu0 0.0
        %1824 = vmatprep.subr.mxu0 0.0
        %1825 = vmatpush1.msra.mxu0 0.0
        %1826 = vmatprep.subr.mxu0 0.0
        %1827 = vmatpush1.msra.mxu0 0.0
        %1828 = vmatprep.subr.mxu0 0.0
        %1829 = vmatpush1.msra.mxu0 0.0
        %1830 = vmatprep.mubr.f32.mxu0 0.0
        %v1831 = vand.u32 %v1346, 4294901760
        %v1832 = vsub.f32 %v1346, %v1831
        %v1833 = vand.u32 %v1832, 4294901760
        %1834 = vmatmul.mubr.f32.gmra.mrb[0].mxu0 %v1833
        %v1835 = vpop.f32.mrb[0].mxu0
        %v1836 = vadd.f32 %v1712, %v1835
        %v1837 = vpop.f32.mrb[0].mxu0
        %1838 = vmatprep.mubr.f32.mxu0 0.0
        %v1839 = vand.u32 %v1349, 4294901760
        %v1840 = vsub.f32 %v1349, %v1839
        %v1841 = vand.u32 %v1840, 4294901760
        %1842 = vmatmul.mubr.f32.gmra.mrb[0].mxu0 %v1841
        %v1843 = vpop.f32.mrb[0].mxu0
        %v1844 = vadd.f32 %v1719, %v1843
        %v1845 = vpop.f32.mrb[0].mxu0
        %1846 = vmatprep.mubr.f32.mxu0 0.0
        %v1847 = vand.u32 %v1352, 4294901760
        %v1848 = vsub.f32 %v1352, %v1847
        %v1849 = vand.u32 %v1848, 4294901760
        %1850 = vmatmul.mubr.f32.gmra.mrb[0].mxu0 %v1849
        %v1851 = vpop.f32.mrb[0].mxu0
        %v1852 = vadd.f32 %v1726, %v1851
        %v1853 = vpop.f32.mrb[0].mxu0
        %1854 = vmatprep.mubr.f32.mxu0 0.0
        %v1855 = vand.u32 %v1355, 4294901760
        %v1856 = vsub.f32 %v1355, %v1855
        %v1857 = vand.u32 %v1856, 4294901760
        %1858 = vmatmul.mubr.f32.gmra.mrb[0].mxu0 %v1857
        %v1859 = vpop.f32.mrb[0].mxu0
        %v1860 = vadd.f32 %v1733, %v1859
        %v1861 = vpop.f32.mrb[0].mxu0
        %1862 = vmatprep.mubr.f32.mxu0 0.0
        %v1863 = vand.u32 %v1358, 4294901760
        %v1864 = vsub.f32 %v1358, %v1863
        %v1865 = vand.u32 %v1864, 4294901760
        %1866 = vmatmul.mubr.f32.gmra.mrb[0].mxu0 %v1865
        %v1867 = vpop.f32.mrb[0].mxu0
        %v1868 = vadd.f32 %v1740, %v1867
        %v1869 = vpop.f32.mrb[0].mxu0
        %1870 = vmatprep.mubr.f32.mxu0 0.0
        %v1871 = vand.u32 %v1361, 4294901760
        %v1872 = vsub.f32 %v1361, %v1871
        %v1873 = vand.u32 %v1872, 4294901760
        %1874 = vmatmul.mubr.f32.gmra.mrb[0].mxu0 %v1873
        %v1875 = vpop.f32.mrb[0].mxu0
        %v1876 = vadd.f32 %v1747, %v1875
        %v1877 = vpop.f32.mrb[0].mxu0
        %1878 = vmatprep.mubr.f32.mxu0 0.0
        %v1879 = vand.u32 %v1364, 4294901760
        %v1880 = vsub.f32 %v1364, %v1879
        %v1881 = vand.u32 %v1880, 4294901760
        %1882 = vmatmul.mubr.f32.gmra.mrb[0].mxu0 %v1881
        %v1883 = vpop.f32.mrb[0].mxu0
        %v1884 = vadd.f32 %v1754, %v1883
        %v1885 = vpop.f32.mrb[0].mxu0
        %1886 = vmatprep.mubr.f32.mxu0 0.0
        %v1887 = vand.u32 %v1367, 4294901760
        %v1888 = vsub.f32 %v1367, %v1887
        %v1889 = vand.u32 %v1888, 4294901760
        %1890 = vmatmul.mubr.f32.gmra.mrb[0].mxu0 %v1889
        %v1891 = vpop.f32.mrb[0].mxu0
        %v1892 = vadd.f32 %v1761, %v1891
        %v1893 = vpop.f32.mrb[0].mxu0
        %1894 = vdwg.mxu0
        %1895 = vmatprep.subr.mxu0 0.0
        %v1896 = vand.u32 %v1342, 4294901760
        %v1897 = vsub.f32 %v1342, %v1896
        %v1898 = vand.u32 %v1897, 4294901760
        %1899 = vmatpush1.msra.mxu0 %v1898
        %1900 = vmatprep.subr.mxu0 0.0
        %v1901 = vand.u32 %v1343, 4294901760
        %v1902 = vsub.f32 %v1343, %v1901
        %v1903 = vand.u32 %v1902, 4294901760
        %1904 = vmatpush1.msra.mxu0 %v1903
        %1905 = vmatprep.subr.mxu0 0.0
        %1906 = vmatpush1.msra.mxu0 0.0
        %1907 = vmatprep.subr.mxu0 0.0
        %1908 = vmatpush1.msra.mxu0 0.0
        %1909 = vmatprep.subr.mxu0 0.0
        %1910 = vmatpush1.msra.mxu0 0.0
        %1911 = vmatprep.subr.mxu0 0.0
        %1912 = vmatpush1.msra.mxu0 0.0
        %1913 = vmatprep.subr.mxu0 0.0
        %1914 = vmatpush1.msra.mxu0 0.0
        %1915 = vmatprep.subr.mxu0 0.0
        %1916 = vmatpush1.msra.mxu0 0.0
        %1917 = vmatprep.subr.mxu0 0.0
        %1918 = vmatpush1.msra.mxu0 0.0
        %1919 = vmatprep.subr.mxu0 0.0
        %1920 = vmatpush1.msra.mxu0 0.0
        %1921 = vmatprep.subr.mxu0 0.0
        %1922 = vmatpush1.msra.mxu0 0.0
        %1923 = vmatprep.subr.mxu0 0.0
        %1924 = vmatpush1.msra.mxu0 0.0
        %1925 = vmatprep.subr.mxu0 0.0
        %1926 = vmatpush1.msra.mxu0 0.0
        %1927 = vmatprep.subr.mxu0 0.0
        %1928 = vmatpush1.msra.mxu0 0.0
        %1929 = vmatprep.subr.mxu0 0.0
        %1930 = vmatpush1.msra.mxu0 0.0
        %1931 = vmatprep.subr.mxu0 0.0
        %1932 = vmatpush1.msra.mxu0 0.0
        %1933 = vmatprep.subr.mxu0 0.0
        %1934 = vmatpush1.msra.mxu0 0.0
        %1935 = vmatprep.subr.mxu0 0.0
        %1936 = vmatpush1.msra.mxu0 0.0
        %1937 = vmatprep.subr.mxu0 0.0
        %1938 = vmatpush1.msra.mxu0 0.0
        %1939 = vmatprep.subr.mxu0 0.0
        %1940 = vmatpush1.msra.mxu0 0.0
        %1941 = vmatprep.subr.mxu0 0.0
        %1942 = vmatpush1.msra.mxu0 0.0
        %1943 = vmatprep.subr.mxu0 0.0
        %1944 = vmatpush1.msra.mxu0 0.0
        %1945 = vmatprep.subr.mxu0 0.0
        %1946 = vmatpush1.msra.mxu0 0.0
        %1947 = vmatprep.subr.mxu0 0.0
        %1948 = vmatpush1.msra.mxu0 0.0
        %1949 = vmatprep.subr.mxu0 0.0
        %1950 = vmatpush1.msra.mxu0 0.0
        %1951 = vmatprep.subr.mxu0 0.0
        %1952 = vmatpush1.msra.mxu0 0.0
        %1953 = vmatprep.subr.mxu0 0.0
        %1954 = vmatpush1.msra.mxu0 0.0
        %1955 = vmatprep.subr.mxu0 0.0
        %1956 = vmatpush1.msra.mxu0 0.0
        %1957 = vmatprep.subr.mxu0 0.0
        %1958 = vmatpush1.msra.mxu0 0.0
        %1959 = vmatprep.subr.mxu0 0.0
        %1960 = vmatpush1.msra.mxu0 0.0
        %1961 = vmatprep.subr.mxu0 0.0
        %1962 = vmatpush1.msra.mxu0 0.0
        %1963 = vmatprep.subr.mxu0 0.0
        %1964 = vmatpush1.msra.mxu0 0.0
        %1965 = vmatprep.mubr.f32.mxu0 0.0
        %v1966 = vand.u32 %v1346, 4294901760
        %1967 = vmatmul.mubr.f32.gmra.mrb[0].mxu0 %v1966
        %v1968 = vpop.f32.mrb[0].mxu0
        %v1969 = vadd.f32 %v1836, %v1968
        %v1970 = vpop.f32.mrb[0].mxu0
        %1971 = vmatprep.mubr.f32.mxu0 0.0
        %v1972 = vand.u32 %v1349, 4294901760
        %1973 = vmatmul.mubr.f32.gmra.mrb[0].mxu0 %v1972
        %v1974 = vpop.f32.mrb[0].mxu0
        %v1975 = vadd.f32 %v1844, %v1974
        %v1976 = vpop.f32.mrb[0].mxu0
        %1977 = vmatprep.mubr.f32.mxu0 0.0
        %v1978 = vand.u32 %v1352, 4294901760
        %1979 = vmatmul.mubr.f32.gmra.mrb[0].mxu0 %v1978
        %v1980 = vpop.f32.mrb[0].mxu0
        %v1981 = vadd.f32 %v1852, %v1980
        %v1982 = vpop.f32.mrb[0].mxu0
        %1983 = vmatprep.mubr.f32.mxu0 0.0
        %v1984 = vand.u32 %v1355, 4294901760
        %1985 = vmatmul.mubr.f32.gmra.mrb[0].mxu0 %v1984
        %v1986 = vpop.f32.mrb[0].mxu0
        %v1987 = vadd.f32 %v1860, %v1986
        %v1988 = vpop.f32.mrb[0].mxu0
        %1989 = vmatprep.mubr.f32.mxu0 0.0
        %v1990 = vand.u32 %v1358, 4294901760
        %1991 = vmatmul.mubr.f32.gmra.mrb[0].mxu0 %v1990
        %v1992 = vpop.f32.mrb[0].mxu0
        %v1993 = vadd.f32 %v1868, %v1992
        %v1994 = vpop.f32.mrb[0].mxu0
        %1995 = vmatprep.mubr.f32.mxu0 0.0
        %v1996 = vand.u32 %v1361, 4294901760
        %1997 = vmatmul.mubr.f32.gmra.mrb[0].mxu0 %v1996
        %v1998 = vpop.f32.mrb[0].mxu0
        %v1999 = vadd.f32 %v1876, %v1998
        %v2000 = vpop.f32.mrb[0].mxu0
        %2001 = vmatprep.mubr.f32.mxu0 0.0
        %v2002 = vand.u32 %v1364, 4294901760
        %2003 = vmatmul.mubr.f32.gmra.mrb[0].mxu0 %v2002
        %v2004 = vpop.f32.mrb[0].mxu0
        %v2005 = vadd.f32 %v1884, %v2004
        %v2006 = vpop.f32.mrb[0].mxu0
        %2007 = vmatprep.mubr.f32.mxu0 0.0
        %v2008 = vand.u32 %v1367, 4294901760
        %2009 = vmatmul.mubr.f32.gmra.mrb[0].mxu0 %v2008
        %v2010 = vpop.f32.mrb[0].mxu0
        %v2011 = vadd.f32 %v1892, %v2010
        %v2012 = vpop.f32.mrb[0].mxu0
        %2013 = vdwg.mxu0
        %2014 = vmatprep.subr.mxu0 0.0
        %v2015 = vand.u32 %v1342, 4294901760
        %2016 = vmatpush1.msra.mxu0 %v2015
        %2017 = vmatprep.subr.mxu0 0.0
        %v2018 = vand.u32 %v1343, 4294901760
        %2019 = vmatpush1.msra.mxu0 %v2018
        %2020 = vmatprep.subr.mxu0 0.0
        %2021 = vmatpush1.msra.mxu0 0.0
        %2022 = vmatprep.subr.mxu0 0.0
        %2023 = vmatpush1.msra.mxu0 0.0
        %2024 = vmatprep.subr.mxu0 0.0
        %2025 = vmatpush1.msra.mxu0 0.0
        %2026 = vmatprep.subr.mxu0 0.0
        %2027 = vmatpush1.msra.mxu0 0.0
        %2028 = vmatprep.subr.mxu0 0.0
        %2029 = vmatpush1.msra.mxu0 0.0
        %2030 = vmatprep.subr.mxu0 0.0
        %2031 = vmatpush1.msra.mxu0 0.0
        %2032 = vmatprep.subr.mxu0 0.0
        %2033 = vmatpush1.msra.mxu0 0.0
        %2034 = vmatprep.subr.mxu0 0.0
        %2035 = vmatpush1.msra.mxu0 0.0
        %2036 = vmatprep.subr.mxu0 0.0
        %2037 = vmatpush1.msra.mxu0 0.0
        %2038 = vmatprep.subr.mxu0 0.0
        %2039 = vmatpush1.msra.mxu0 0.0
        %2040 = vmatprep.subr.mxu0 0.0
        %2041 = vmatpush1.msra.mxu0 0.0
        %2042 = vmatprep.subr.mxu0 0.0
        %2043 = vmatpush1.msra.mxu0 0.0
        %2044 = vmatprep.subr.mxu0 0.0
        %2045 = vmatpush1.msra.mxu0 0.0
        %2046 = vmatprep.subr.mxu0 0.0
        %2047 = vmatpush1.msra.mxu0 0.0
        %2048 = vmatprep.subr.mxu0 0.0
        %2049 = vmatpush1.msra.mxu0 0.0
        %2050 = vmatprep.subr.mxu0 0.0
        %2051 = vmatpush1.msra.mxu0 0.0
        %2052 = vmatprep.subr.mxu0 0.0
        %2053 = vmatpush1.msra.mxu0 0.0
        %2054 = vmatprep.subr.mxu0 0.0
        %2055 = vmatpush1.msra.mxu0 0.0
        %2056 = vmatprep.subr.mxu0 0.0
        %2057 = vmatpush1.msra.mxu0 0.0
        %2058 = vmatprep.subr.mxu0 0.0
        %2059 = vmatpush1.msra.mxu0 0.0
        %2060 = vmatprep.subr.mxu0 0.0
        %2061 = vmatpush1.msra.mxu0 0.0
        %2062 = vmatprep.subr.mxu0 0.0
        %2063 = vmatpush1.msra.mxu0 0.0
        %2064 = vmatprep.subr.mxu0 0.0
        %2065 = vmatpush1.msra.mxu0 0.0
        %2066 = vmatprep.subr.mxu0 0.0
        %2067 = vmatpush1.msra.mxu0 0.0
        %2068 = vmatprep.subr.mxu0 0.0
        %2069 = vmatpush1.msra.mxu0 0.0
        %2070 = vmatprep.subr.mxu0 0.0
        %2071 = vmatpush1.msra.mxu0 0.0
        %2072 = vmatprep.subr.mxu0 0.0
        %2073 = vmatpush1.msra.mxu0 0.0
        %2074 = vmatprep.subr.mxu0 0.0
        %2075 = vmatpush1.msra.mxu0 0.0
        %2076 = vmatprep.subr.mxu0 0.0
        %2077 = vmatpush1.msra.mxu0 0.0
        %2078 = vmatprep.subr.mxu0 0.0
        %2079 = vmatpush1.msra.mxu0 0.0
        %2080 = vmatprep.mubr.f32.mxu0 0.0
        %v2081 = vand.u32 %v1346, 4294901760
        %2082 = vmatmul.mubr.f32.gmra.mrb[0].mxu0 %v2081
        %v2083 = vpop.f32.mrb[0].mxu0
        %v2084 = vadd.f32 %v1969, %v2083
        %v2085 = vpop.f32.mrb[0].mxu0
        %2086 = vmatprep.mubr.f32.mxu0 0.0
        %v2087 = vand.u32 %v1349, 4294901760
        %2088 = vmatmul.mubr.f32.gmra.mrb[0].mxu0 %v2087
        %v2089 = vpop.f32.mrb[0].mxu0
        %v2090 = vadd.f32 %v1975, %v2089
        %v2091 = vpop.f32.mrb[0].mxu0
        %2092 = vmatprep.mubr.f32.mxu0 0.0
        %v2093 = vand.u32 %v1352, 4294901760
        %2094 = vmatmul.mubr.f32.gmra.mrb[0].mxu0 %v2093
        %v2095 = vpop.f32.mrb[0].mxu0
        %v2096 = vadd.f32 %v1981, %v2095
        %v2097 = vpop.f32.mrb[0].mxu0
        %2098 = vmatprep.mubr.f32.mxu0 0.0
        %v2099 = vand.u32 %v1355, 4294901760
        %2100 = vmatmul.mubr.f32.gmra.mrb[0].mxu0 %v2099
        %v2101 = vpop.f32.mrb[0].mxu0
        %v2102 = vadd.f32 %v1987, %v2101
        %v2103 = vpop.f32.mrb[0].mxu0
        %2104 = vmatprep.mubr.f32.mxu0 0.0
        %v2105 = vand.u32 %v1358, 4294901760
        %2106 = vmatmul.mubr.f32.gmra.mrb[0].mxu0 %v2105
        %v2107 = vpop.f32.mrb[0].mxu0
        %v2108 = vadd.f32 %v1993, %v2107
        %v2109 = vpop.f32.mrb[0].mxu0
        %2110 = vmatprep.mubr.f32.mxu0 0.0
        %v2111 = vand.u32 %v1361, 4294901760
        %2112 = vmatmul.mubr.f32.gmra.mrb[0].mxu0 %v2111
        %v2113 = vpop.f32.mrb[0].mxu0
        %v2114 = vadd.f32 %v1999, %v2113
        %v2115 = vpop.f32.mrb[0].mxu0
        %2116 = vmatprep.mubr.f32.mxu0 0.0
        %v2117 = vand.u32 %v1364, 4294901760
        %2118 = vmatmul.mubr.f32.gmra.mrb[0].mxu0 %v2117
        %v2119 = vpop.f32.mrb[0].mxu0
        %v2120 = vadd.f32 %v2005, %v2119
        %v2121 = vpop.f32.mrb[0].mxu0
        %2122 = vmatprep.mubr.f32.mxu0 0.0
        %v2123 = vand.u32 %v1367, 4294901760
        %2124 = vmatmul.mubr.f32.gmra.mrb[0].mxu0 %v2123
        %v2125 = vpop.f32.mrb[0].mxu0
        %v2126 = vadd.f32 %v2011, %v2125
        %v2127 = vpop.f32.mrb[0].mxu0
        %2128 = vdwg.mxu0
        %v2129 = vld [vmem:[%s305] sm:$0xff]
        %v2130 = vld [vmem:[%s305 + $0x8] sm:$0xff]
        %v2131 = vld [vmem:[%s305 + $0x10] sm:$0xff]
        %v2132 = vld [vmem:[%s305 + $0x18] sm:$0xff]
        %v2133 = vld [vmem:[%s305 + $0x20] sm:$0xff]
        %v2134 = vld [vmem:[%s305 + $0x28] sm:$0xff]
        %v2135 = vld [vmem:[%s305 + $0x30] sm:$0xff]
        %v2136 = vld [vmem:[%s305 + $0x38] sm:$0xff]
        %v2137 = vrcp.pop %v2129
        %v2138 = vrcp.pop %v2130
        %v2139 = vrcp.pop %v2131
        %v2140 = vrcp.pop %v2132
        %v2141 = vrcp.pop %v2133
        %v2142 = vrcp.pop %v2134
        %v2143 = vrcp.pop %v2135
        %v2144 = vrcp.pop %v2136
        %2146 = vset.pattern.permute.xlu0 0
        %2147 = vperm.xlu0 %2146, %v2137
        %v2148 = vpop.permute.xlu0 %2147
        %2151 = vset.pattern.permute.xlu0 0
        %2152 = vperm.xlu0 %2151, %v2138
        %v2153 = vpop.permute.xlu0 %2152
        %2156 = vset.pattern.permute.xlu0 0
        %2157 = vperm.xlu0 %2156, %v2139
        %v2158 = vpop.permute.xlu0 %2157
        %2161 = vset.pattern.permute.xlu0 0
        %2162 = vperm.xlu0 %2161, %v2140
        %v2163 = vpop.permute.xlu0 %2162
        %2166 = vset.pattern.permute.xlu0 0
        %2167 = vperm.xlu0 %2166, %v2141
        %v2168 = vpop.permute.xlu0 %2167
        %2171 = vset.pattern.permute.xlu0 0
        %2172 = vperm.xlu0 %2171, %v2142
        %v2173 = vpop.permute.xlu0 %2172
        %2176 = vset.pattern.permute.xlu0 0
        %2177 = vperm.xlu0 %2176, %v2143
        %v2178 = vpop.permute.xlu0 %2177
        %2181 = vset.pattern.permute.xlu0 0
        %2182 = vperm.xlu0 %2181, %v2144
        %v2183 = vpop.permute.xlu0 %2182
        %v2185 = vmul.f32 %v2084, %v2148
        %v2186 = vmul.f32 %v2090, %v2153
        %v2187 = vmul.f32 %v2096, %v2158
        %v2188 = vmul.f32 %v2102, %v2163
        %v2189 = vmul.f32 %v2108, %v2168
        %v2190 = vmul.f32 %v2114, %v2173
        %v2191 = vmul.f32 %v2120, %v2178
        %v2192 = vmul.f32 %v2126, %v2183
        %2193 = vst [vmem:[%s288] sm:$0xff] %v2185
        %2194 = vst [vmem:[%s288 + $0x8] sm:$0xff] %v2186
        %2195 = vst [vmem:[%s288 + $0x10] sm:$0xff] %v2187
        %2196 = vst [vmem:[%s288 + $0x18] sm:$0xff] %v2188
        %2197 = vst [vmem:[%s288 + $0x20] sm:$0xff] %v2189
        %2198 = vst [vmem:[%s288 + $0x28] sm:$0xff] %v2190
        %2199 = vst [vmem:[%s288 + $0x30] sm:$0xff] %v2191
        %2200 = vst [vmem:[%s288 + $0x38] sm:$0xff] %v2192
        %s2201 = sand.u32 %s156, 1
        %s2202 = scalar_lea.sflag [#allocation8], %s2201
        %s2203 = sand.u32 %s156, 1
        %s2204 = smul.addr %s2203, 64
        %s2205 = scalar_lea.vmem [#allocation9], %s2204
        // Predicated region
        $region41: #{tpu_custom_call.1} parent=35 // pred_check
          %p2206 = pneg %p166
        $region42: #{tpu_custom_call.1} parent=35 // pred_check_branch
          %2208 = sbr.rel (%p2206) target = $region44
        $region43: #{tpu_custom_call.1} parent=35 // pred_region
          %s2209 = smul.u32 8, %s33
          %s2211 = ssub.s32 1024, 1024
          %2212 = vsyncadd %s2202, %s2211
          %s2213 = smul.addr %s32, 8
          %s2214 = sadd.s32 %s2209, %s2213
          %s2215 = smul.addr %s2214, 128
          %s2216 = scalar_lea.hbm %s5, %s2215
          %s2217 = sshll.u32 %s2205, 4
          %s2218 = int_to_ptr.vmem [resolvable:$true] %s2217
          %2223 = dma.vmem_to_hbm [thread:$0]  %s2218, 1024, %s2216, %s2202, 128, 128, 8
        $region44: #{tpu_custom_call.1} parent=35 // pred_fallthru
          _
      $region36: #{tpu_custom_call.1} parent=5 // pred_fallthru
        _
      %p2224 = scmp.le.s32.totalorder 2, %s23
      // Predicated region
      $region45: #{tpu_custom_call.1} parent=5 // pred_check
        %p2225 = pneg %p2224
      $region46: #{tpu_custom_call.1} parent=5 // pred_check_branch
        %2227 = sbr.rel (%p2225) target = $region48
      $region47: #{tpu_custom_call.1} parent=5 // pred_region
        %s2228 = ssub.s32 %s23, 2
        // Predicated region
        $region49: #{tpu_custom_call.1} parent=47 // pred_check
          %p2229 = pneg %p172
        $region50: #{tpu_custom_call.1} parent=47 // pred_check_branch
          %2231 = sbr.rel (%p2229) target = $region52
        $region51: #{tpu_custom_call.1} parent=47 // pred_region
          %s2232 = sand.u32 %s157, 1
          %s2233 = scalar_lea.sflag [#allocation8], %s2232
          %s2234 = sand.u32 %s157, 1
          %s2235 = smul.addr %s2234, 64
          %s2236 = scalar_lea.vmem [#allocation9], %s2235
          %2237 = dma.done %s2233, 1024
        $region52: #{tpu_custom_call.1} parent=47 // pred_fallthru
          _
      $region48: #{tpu_custom_call.1} parent=5 // pred_fallthru
        _
    $region6: #{tpu_custom_call.1} parent=1 // loop_footer
      %s27 = sadd.s32 1, %s23
    $region7: #{tpu_custom_call.1} parent=1 // loop_footer_branch
      %22 = sbr.rel target = $region3
    $region8: #{tpu_custom_call.1} parent=1 // loop_exit
      _
    %2238 = vsyncpa [#allocation7], 1
    %s2239 = scalar_lea.sflag [#allocation7], 1
    %2240 = vsyncpa %s2239, 1
    %2241 = vsyncpa [#allocation8], 1
    %s2242 = scalar_lea.sflag [#allocation8], 1
    %2243 = vsyncpa %s2242, 1

</llo_original>
